<compile_context>
chip_gen: v6e
topology: v6e:2x2x1
jax: 0.10.0
libtpu: 0.0.40
codegen_flags: <defaults>
</compile_context>

<pallas_src>
import functools

import jax
import jax.numpy as jnp
from jax.experimental import pallas as pl
from jax.experimental.pallas import tpu as pltpu


def _round_up(x, m):
    return ((x + m - 1) // m) * m


def _pad_to(x, shape):
    pads = [(0, s - d) for d, s in zip(x.shape, shape)]
    if any(p[1] for p in pads):
        return jnp.pad(x, pads)
    return x


def _tpu_config():
    """(vmem_limit_bytes, tile_m, tile_k, min_i_tiles, stream_buffers)."""
    vmem_cap = None
    try:
        vmem_cap = int(pltpu.get_tpu_info().vmem_capacity_bytes)
    except Exception:
        pass
    if vmem_cap is not None and vmem_cap > 80 * 1024 * 1024:
        # v5e / v6e: 128 MiB physical VMEM -> big tiles, deep streaming buffers.
        return 96 * 1024 * 1024, 512, 1024, 1, 3
    # v7x (64 MiB / TC, 2 TCs) or unknown: conservative budget, split i axis.
    return 48 * 1024 * 1024, 256, 512, 2, 2


# --------------------------------------------------------------------------
# Kernels (grid = (dst-row tiles i [parallel], src reduction tiles k [arbitrary]))
# --------------------------------------------------------------------------

def _sage_kernel_pf(a_ref, xwn_ref, xd_ref, ws_ref, b_ref, o_ref, acc_ref,
                    *, apply_relu):
    """Project-first layer: neigh = A @ (X @ Wn), with X @ Wn precomputed.

    acc (tm, d_out_p) f32 is seeded with the self term + bias at k == 0.
    """
    k = pl.program_id(1)

    @pl.when(k == 0)
    def _init():
        acc_ref[...] = (jnp.dot(xd_ref[...], ws_ref[...],
                                preferred_element_type=jnp.float32)
                        + b_ref[...])

    acc_ref[...] += jnp.dot(a_ref[...], xwn_ref[...],
                            preferred_element_type=jnp.float32)

    @pl.when(k == pl.num_programs(1) - 1)
    def _finalize():
        out = acc_ref[...]
        if apply_relu:
            out = jnp.maximum(out, 0.0)
        o_ref[...] = out.astype(o_ref.dtype)


def _sage_kernel_af(a_ref, xs_ref, xd_ref, wn_ref, ws_ref, b_ref, o_ref,
                    acc_ref, *, apply_relu):
    """Aggregate-first layer: neigh = (A @ X) @ Wn.

    acc (tm, d_in_p) f32; the Wn matmul at finalize stays in f32 (no bf16
    down-cast of the aggregated sums).
    """
    k = pl.program_id(1)

    @pl.when(k == 0)
    def _init():
        acc_ref[...] = jnp.zeros_like(acc_ref)

    acc_ref[...] += jnp.dot(a_ref[...], xs_ref[...],
                            preferred_element_type=jnp.float32)

    @pl.when(k == pl.num_programs(1) - 1)
    def _finalize():
        out = (jnp.dot(acc_ref[...], wn_ref[...],
                       preferred_element_type=jnp.float32)
               + jnp.dot(xd_ref[...], ws_ref[...],
                         preferred_element_type=jnp.float32)
               + b_ref[...])
        if apply_relu:
            out = jnp.maximum(out, 0.0)
        o_ref[...] = out.astype(o_ref.dtype)


# --------------------------------------------------------------------------
# Layer wrapper
# --------------------------------------------------------------------------

def sage_layer(a_norm, x, w_neigh, w_self, bias, mask=None, *, apply_relu,
               out_dtype=jnp.float32, tile_m=None, tile_k=None):
    """One SAGEConv('mean') layer (+ optional ReLU and folded dropout mask).

    a_norm : [n_dst, n_src] row-normalized dense adjacency (ideally already bf16).
    x      : [n_src, d_in] node features; dst nodes are the row prefix.
    """
    n_dst, n_src = a_norm.shape
    d_in, d_out = w_neigh.shape

    vmem_limit, cfg_tm, cfg_tk, min_i_tiles, stream_bufs = _tpu_config()
    tile_m = cfg_tm if tile_m is None else tile_m
    tile_k = cfg_tk if tile_k is None else tile_k

    w_neigh = w_neigh.astype(jnp.float32)
    w_self = w_self.astype(jnp.float32)
    bias = bias.astype(jnp.float32)

    # Fold deterministic variational-dropout mask: relu(z)*m == relu(z*m), m>=0.
    if mask is not None:
        m = jnp.clip(mask.astype(jnp.float32), 0.0, 1.0)
        w_neigh = w_neigh * m[None, :]
        w_self = w_self * m[None, :]
        bias = bias * m

    # Lane/sublane-friendly padding.  bf16 outputs want 16-row-aligned blocks.
    row_align = 16 if jnp.dtype(out_dtype) == jnp.dtype(jnp.bfloat16) else 8
    d_in_p = _round_up(d_in, 128)
    d_out_p = _round_up(d_out, 128)

    tm = min(tile_m, _round_up(n_dst, row_align))
    if min_i_tiles > 1:  # v7x: give the 'parallel' i axis work for both TCs
        tm = min(tm, max(row_align,
                         _round_up(pl.cdiv(n_dst, min_i_tiles), row_align)))
    tk = min(tile_k, _round_up(n_src, 128))
    n_dst_p = _round_up(n_dst, tm)
    n_src_p = _round_up(n_src, tk)
    n_rows_p = max(n_src_p, n_dst_p, x.shape[0])  # X must cover dst-prefix tiles

    # A streamed as bf16 (cast only if the caller didn't already provide bf16).
    if a_norm.dtype != jnp.bfloat16:
        a_norm = a_norm.astype(jnp.bfloat16)
    a_p = _pad_to(a_norm, (n_dst_p, n_src_p))
    x_p = _pad_to(x.astype(jnp.bfloat16), (n_rows_p, d_in_p))
    ws_p = _pad_to(w_self, (d_in_p, d_out_p)).astype(jnp.bfloat16)
    b_p = _pad_to(bias.reshape(1, d_out), (1, d_out_p))

    # Project-then-aggregate only when it genuinely shrinks both the in-kernel
    # A-matmul width and the streamed X bytes (projection is hoisted + done once).
    project_first = d_out_p < d_in_p

    out_bytes = jnp.dtype(out_dtype).itemsize
    if project_first:
        wn_bf = _pad_to(w_neigh, (d_in_p, d_out_p)).astype(jnp.bfloat16)
        # Hoisted projection: computed ONCE as a plain XLA bf16 matmul instead
        # of per dst-row tile inside the kernel.
        xwn_p = jnp.dot(x_p, wn_bf,
                        preferred_element_type=jnp.float32).astype(jnp.bfloat16)
        kernel = functools.partial(_sage_kernel_pf, apply_relu=apply_relu)
        args = (a_p, xwn_p, x_p, ws_p, b_p)
        acc_cols = d_out_p
        flops = 2 * n_dst_p * n_src_p * d_out_p + 2 * n_dst_p * d_in_p * d_out_p
        bytes_accessed = (a_p.size * 2 + n_src_p * d_out_p * 2
                          + n_dst_p * d_in_p * 2 + ws_p.size * 2 + b_p.size * 4
                          + n_dst_p * d_out_p * out_bytes)
    else:
        wn_f32 = _pad_to(w_neigh, (d_in_p, d_out_p))  # f32 resident weight
        kernel = functools.partial(_sage_kernel_af, apply_relu=apply_relu)
        args = (a_p, x_p, x_p, wn_f32, ws_p, b_p)
        acc_cols = d_in_p
        flops = (2 * n_dst_p * n_src_p * d_in_p
                 + 4 * n_dst_p * d_in_p * d_out_p)
        bytes_accessed = (a_p.size * 2 + n_src_p * d_in_p * 2
                          + n_dst_p * d_in_p * 2 + wn_f32.size * 4
                          + ws_p.size * 2 + b_p.size * 4
                          + n_dst_p * d_out_p * out_bytes)

    grid = (n_dst_p // tm, n_src_p // tk)

    def _build(use_pipeline_mode):
        def spec(shape, index_map, nbuf=None):
            if nbuf is None or not use_pipeline_mode:
                return pl.BlockSpec(shape, index_map)
            return pl.BlockSpec(shape, index_map, pipeline_mode=pl.Buffered(nbuf))

        a_spec = spec((tm, tk), lambda i, k: (i, k), nbuf=stream_bufs)
        xd_spec = spec((tm, d_in_p), lambda i, k: (i, 0))
        ws_spec = spec((d_in_p, d_out_p), lambda i, k: (0, 0), nbuf=1)
        b_spec = spec((1, d_out_p), lambda i, k: (0, 0), nbuf=1)
        out_spec = pl.BlockSpec((tm, d_out_p), lambda i, k: (i, 0))

        if project_first:
            xs_spec = spec((tk, d_out_p), lambda i, k: (k, 0), nbuf=stream_bufs)
            in_specs = [a_spec, xs_spec, xd_spec, ws_spec, b_spec]
        else:
            xs_spec = spec((tk, d_in_p), lambda i, k: (k, 0), nbuf=stream_bufs)
            wn_spec = spec((d_in_p, d_out_p), lambda i, k: (0, 0), nbuf=1)
            in_specs = [a_spec, xs_spec, xd_spec, wn_spec, ws_spec, b_spec]

        return pl.pallas_call(
            kernel,
            out_shape=jax.ShapeDtypeStruct((n_dst_p, d_out_p), out_dtype),
            grid=grid,
            in_specs=in_specs,
            out_specs=out_spec,
            scratch_shapes=[pltpu.VMEM((tm, acc_cols), jnp.float32)],
            compiler_params=pltpu.CompilerParams(
                dimension_semantics=("parallel", "arbitrary"),
                vmem_limit_bytes=vmem_limit),
            cost_estimate=pl.CostEstimate(flops=int(flops), transcendentals=0,
                                          bytes_accessed=int(bytes_accessed)),
        )

    try:
        out_p = _build(use_pipeline_mode=True)(*args)
    except Exception:
        # Fallback: default double-buffering if pipeline_mode=Buffered(n) is
        # not supported by the installed jax / Mosaic version.
        out_p = _build(use_pipeline_mode=False)(*args)

    return out_p[:n_dst, :d_out]


def graphsage_forward(params, blocks, h):
    """Graphsage.forward(blocks, h) with use_vardrop=True (deterministic)."""
    a1, a2 = blocks
    # Layer 1: SAGEConv + ReLU + deterministic variational dropout (folded).
    x = sage_layer(a1, h,
                   params["w_neigh1"], params["w_self1"], params["b1"],
                   mask=params["vardrop_p"], apply_relu=True,
                   out_dtype=jnp.bfloat16)          # bf16 intermediate activation
    # Layer 2: plain SAGEConv.
    x = sage_layer(a2, x,
                   params["w_neigh2"], params["w_self2"], params["b2"],
                   mask=None, apply_relu=False, out_dtype=jnp.float32)
    return x


def _row_normalize(adj):
    deg = jnp.sum(adj, axis=1, keepdims=True)
    # Produce the normalized adjacency directly in bf16 so the kernel wrapper
    # never re-streams A through an extra f32 cast pass.
    return (adj / jnp.maximum(deg, 1.0)).astype(jnp.bfloat16)


if __name__ == "__main__":
    # Small but branch-covering shapes: layer 1 exercises project-first
    # (d_in_p=256 > d_out_p=128), layer 2 exercises aggregate-first.
    in_dim, hid_dim, out_dim = 192, 64, 8
    n0, n1, n2 = 64, 32, 16     # src nodes, dst of block0 (= src of block1), dst of block1
    dropout = 0.5

    key = jax.random.PRNGKey(0)
    ks = jax.random.split(key, 8)

    h = jax.random.normal(ks[0], (n0, in_dim), jnp.float32)

    a1 = _row_normalize(
        jax.random.bernoulli(ks[1], 0.4, (n1, n0)).astype(jnp.float32))
    a2 = _row_normalize(
        jax.random.bernoulli(ks[2], 0.4, (n2, n1)).astype(jnp.float32))

    def init(k, shape, fan_in):
        b = 1.0 / (fan_in ** 0.5)
        return jax.random.uniform(k, shape, jnp.float32, -b, b)

    params = {
        "w_neigh1": init(ks[3], (in_dim, hid_dim), in_dim),
        "w_self1":  init(ks[4], (in_dim, hid_dim), in_dim),
        "b1":       jnp.zeros((hid_dim,), jnp.float32),
        "w_neigh2": init(ks[5], (hid_dim, out_dim), hid_dim),
        "w_self2":  init(ks[6], (hid_dim, out_dim), hid_dim),
        "b2":       jnp.zeros((out_dim,), jnp.float32),
        # VariationalDropout initial_rates = [dropout] * hid_dim, deterministic
        "vardrop_p": jnp.full((hid_dim,), dropout, jnp.float32),
    }

    out = graphsage_forward(params, (a1, a2), h)
    out = jax.block_until_ready(out)

    # pure-JAX f32 reference (kernel uses bf16 MXU inputs -> loose tolerance)
    def ref():
        A1 = a1.astype(jnp.float32)
        A2 = a2.astype(jnp.float32)
        x = jnp.maximum(
            h[:n1] @ params["w_self1"] + (A1 @ h) @ params["w_neigh1"]
            + params["b1"], 0.0)
        x = x * jnp.clip(params["vardrop_p"], 0.0, 1.0)[None, :]
        return (x[:n2] @ params["w_self2"] + (A2 @ x) @ params["w_neigh2"]
                + params["b2"])

    r = ref()
    assert out.shape == (n2, out_dim)
    assert jnp.allclose(out, r, atol=5e-2, rtol=5e-2), float(jnp.max(jnp.abs(out - r)))
    print("KERNEL_OK")
</pallas_src>

<mosaic_0001>
module attributes {stable_mosaic.version = 11 : i64} {
  func.func @_sage_kernel_pf(%arg0: i32, %arg1: i32, %arg2: memref<16x128xbf16, #tpu.memory_space<vmem>>, %arg3: memref<128x128xbf16, #tpu.memory_space<vmem>>, %arg4: memref<16x256xbf16, #tpu.memory_space<vmem>>, %arg5: memref<256x128xbf16, #tpu.memory_space<vmem>>, %arg6: memref<1x128xf32, #tpu.memory_space<vmem>>, %arg7: memref<16x128xbf16, #tpu.memory_space<vmem>>, %arg8: memref<16x128xf32, #tpu.memory_space<vmem>>) attributes {dimension_semantics = [#tpu.dimension_semantics<parallel>, #tpu.dimension_semantics<arbitrary>], iteration_bounds = array<i64: 2, 1>, scalar_prefetch = 0 : i64, scratch_operands = 1 : i64, tpu.core_type = #tpu.core_type<tc>, window_params = [{pipeline_mode = #tpu.pipeline_mode<double_buffered>, transform_indices = @transform_0, window_bounds = array<i64: 16, 128>}, {pipeline_mode = #tpu.pipeline_mode<double_buffered>, transform_indices = @transform_1, window_bounds = array<i64: 128, 128>}, {transform_indices = @transform_2, window_bounds = array<i64: 16, 256>}, {pipeline_mode = #tpu.pipeline_mode<synchronous>, transform_indices = @transform_3, window_bounds = array<i64: 256, 128>}, {pipeline_mode = #tpu.pipeline_mode<synchronous>, transform_indices = @transform_4, window_bounds = array<i64: 1, 128>}, {transform_indices = @transform_5, window_bounds = array<i64: 16, 128>}]} {
    %c0_i32 = arith.constant 0 : i32
    %0 = arith.cmpi eq, %arg1, %c0_i32 : i32
    %1 = arith.extui %0 : i1 to i32
    %c0_i32_0 = arith.constant 0 : i32
    %2 = arith.cmpi ne, %1, %c0_i32_0 : i32
    scf.if %2 {
      %c0_10 = arith.constant 0 : index
      %c0_11 = arith.constant 0 : index
      %12 = vector.load %arg4[%c0_10, %c0_11] : memref<16x256xbf16, #tpu.memory_space<vmem>>, vector<16x256xbf16>
      %c0_12 = arith.constant 0 : index
      %c0_13 = arith.constant 0 : index
      %13 = vector.load %arg5[%c0_12, %c0_13] : memref<256x128xbf16, #tpu.memory_space<vmem>>, vector<256x128xbf16>
      %cst_14 = arith.constant dense<0.000000e+00> : vector<16x128xf32>
      %14 = tpu.matmul %12, %13, %cst_14 {dimension_numbers = #tpu.dot_dimension_numbers<[1], [0], [0], [1], [0, 0, 1, 1], [], []>} : vector<16x256xbf16>, vector<256x128xbf16>, vector<16x128xf32> -> vector<16x128xf32>
      %c0_15 = arith.constant 0 : index
      %c0_16 = arith.constant 0 : index
      %15 = vector.load %arg6[%c0_15, %c0_16] : memref<1x128xf32, #tpu.memory_space<vmem>>, vector<1x128xf32>
      %16 = vector.broadcast %15 : vector<1x128xf32> to vector<16x128xf32>
      %17 = arith.addf %14, %16 : vector<16x128xf32>
      %c0_17 = arith.constant 0 : index
      %c0_18 = arith.constant 0 : index
      %18 = vector.load %arg8[%c0_17, %c0_18] : memref<16x128xf32, #tpu.memory_space<vmem>>, vector<16x128xf32>
      tpu.vector_store %arg8[%c0_17, %c0_18], %17 {strides = array<i32>} : memref<16x128xf32, #tpu.memory_space<vmem>>, vector<16x128xf32>,
    } else {
    }
    %c0 = arith.constant 0 : index
    %c0_1 = arith.constant 0 : index
    %3 = vector.load %arg8[%c0, %c0_1] : memref<16x128xf32, #tpu.memory_space<vmem>>, vector<16x128xf32>
    %c0_2 = arith.constant 0 : index
    %c0_3 = arith.constant 0 : index
    %4 = vector.load %arg2[%c0_2, %c0_3] : memref<16x128xbf16, #tpu.memory_space<vmem>>, vector<16x128xbf16>
    %c0_4 = arith.constant 0 : index
    %c0_5 = arith.constant 0 : index
    %5 = vector.load %arg3[%c0_4, %c0_5] : memref<128x128xbf16, #tpu.memory_space<vmem>>, vector<128x128xbf16>
    %cst = arith.constant dense<0.000000e+00> : vector<16x128xf32>
    %6 = tpu.matmul %4, %5, %cst {dimension_numbers = #tpu.dot_dimension_numbers<[1], [0], [0], [1], [0, 0, 1, 1], [], []>} : vector<16x128xbf16>, vector<128x128xbf16>, vector<16x128xf32> -> vector<16x128xf32>
    %7 = arith.addf %3, %6 : vector<16x128xf32>
    %c0_6 = arith.constant 0 : index
    %c0_7 = arith.constant 0 : index
    %8 = vector.load %arg8[%c0_6, %c0_7] : memref<16x128xf32, #tpu.memory_space<vmem>>, vector<16x128xf32>
    tpu.vector_store %arg8[%c0_6, %c0_7], %7 {strides = array<i32>} : memref<16x128xf32, #tpu.memory_space<vmem>>, vector<16x128xf32>,
    %c0_i32_8 = arith.constant 0 : i32
    %9 = arith.cmpi eq, %arg1, %c0_i32_8 : i32
    %10 = arith.extui %9 : i1 to i32
    %c0_i32_9 = arith.constant 0 : i32
    %11 = arith.cmpi ne, %10, %c0_i32_9 : i32
    scf.if %11 {
      %c0_10 = arith.constant 0 : index
      %c0_11 = arith.constant 0 : index
      %12 = vector.load %arg8[%c0_10, %c0_11] : memref<16x128xf32, #tpu.memory_space<vmem>>, vector<16x128xf32>
      %cst_12 = arith.constant 0.000000e+00 : f32
      %13 = vector.broadcast %cst_12 : f32 to vector<16x128xf32>
      %14 = arith.maximumf %12, %13 : vector<16x128xf32>
      %15 = arith.truncf %14 : vector<16x128xf32> to vector<16x128xbf16>
      %c0_13 = arith.constant 0 : index
      %c0_14 = arith.constant 0 : index
      %16 = vector.load %arg7[%c0_13, %c0_14] : memref<16x128xbf16, #tpu.memory_space<vmem>>, vector<16x128xbf16>
      tpu.vector_store %arg7[%c0_13, %c0_14], %15 {strides = array<i32>} : memref<16x128xbf16, #tpu.memory_space<vmem>>, vector<16x128xbf16>,
    } else {
    }
    return
  }
  func.func @transform_0(%arg0: i32, %arg1: i32) -> (i32, i32) {
    %c0_i32 = arith.constant 0 : i32
    return %arg0, %arg1 : i32, i32
  }
  func.func @transform_1(%arg0: i32, %arg1: i32) -> (i32, i32) {
    %c0_i32 = arith.constant 0 : i32
    %c0_i32_0 = arith.constant 0 : i32
    return %arg1, %c0_i32 : i32, i32
  }
  func.func @transform_2(%arg0: i32, %arg1: i32) -> (i32, i32) {
    %c0_i32 = arith.constant 0 : i32
    %c0_i32_0 = arith.constant 0 : i32
    return %arg0, %c0_i32 : i32, i32
  }
  func.func @transform_3(%arg0: i32, %arg1: i32) -> (i32, i32) {
    %c0_i32 = arith.constant 0 : i32
    %c0_i32_0 = arith.constant 0 : i32
    %c0_i32_1 = arith.constant 0 : i32
    return %c0_i32, %c0_i32_0 : i32, i32
  }
  func.func @transform_4(%arg0: i32, %arg1: i32) -> (i32, i32) {
    %c0_i32 = arith.constant 0 : i32
    %c0_i32_0 = arith.constant 0 : i32
    %c0_i32_1 = arith.constant 0 : i32
    return %c0_i32, %c0_i32_0 : i32, i32
  }
  func.func @transform_5(%arg0: i32, %arg1: i32) -> (i32, i32) {
    %c0_i32 = arith.constant 0 : i32
    %c0_i32_0 = arith.constant 0 : i32
    return %arg0, %c0_i32 : i32, i32
  }
}

module attributes {stable_mosaic.version = 11 : i64} {
  func.func @_sage_kernel_pf(%arg0: i32, %arg1: i32, %arg2: memref<16x128xbf16, #tpu.memory_space<vmem>>, %arg3: memref<128x128xbf16, #tpu.memory_space<vmem>>, %arg4: memref<16x256xbf16, #tpu.memory_space<vmem>>, %arg5: memref<256x128xbf16, #tpu.memory_space<vmem>>, %arg6: memref<1x128xf32, #tpu.memory_space<vmem>>, %arg7: memref<16x128xbf16, #tpu.memory_space<vmem>>, %arg8: memref<16x128xf32, #tpu.memory_space<vmem>>) attributes {dimension_semantics = [#tpu.dimension_semantics<parallel>, #tpu.dimension_semantics<arbitrary>], iteration_bounds = array<i64: 2, 1>, scalar_prefetch = 0 : i64, scratch_operands = 1 : i64, tpu.core_type = #tpu.core_type<tc>, window_params = [{transform_indices = @transform_0, window_bounds = array<i64: 16, 128>}, {transform_indices = @transform_1, window_bounds = array<i64: 128, 128>}, {transform_indices = @transform_2, window_bounds = array<i64: 16, 256>}, {pipeline_mode = #tpu.pipeline_mode<synchronous>, transform_indices = @transform_3, window_bounds = array<i64: 256, 128>}, {pipeline_mode = #tpu.pipeline_mode<synchronous>, transform_indices = @transform_4, window_bounds = array<i64: 1, 128>}, {transform_indices = @transform_5, window_bounds = array<i64: 16, 128>}]} {
    %c0_i32 = arith.constant 0 : i32
    %0 = arith.cmpi eq, %arg1, %c0_i32 : i32
    %1 = arith.extui %0 : i1 to i32
    %c0_i32_0 = arith.constant 0 : i32
    %2 = arith.cmpi ne, %1, %c0_i32_0 : i32
    scf.if %2 {
      %c0_10 = arith.constant 0 : index
      %c0_11 = arith.constant 0 : index
      %12 = vector.load %arg4[%c0_10, %c0_11] : memref<16x256xbf16, #tpu.memory_space<vmem>>, vector<16x256xbf16>
      %c0_12 = arith.constant 0 : index
      %c0_13 = arith.constant 0 : index
      %13 = vector.load %arg5[%c0_12, %c0_13] : memref<256x128xbf16, #tpu.memory_space<vmem>>, vector<256x128xbf16>
      %cst_14 = arith.constant dense<0.000000e+00> : vector<16x128xf32>
      %14 = tpu.matmul %12, %13, %cst_14 {dimension_numbers = #tpu.dot_dimension_numbers<[1], [0], [0], [1], [0, 0, 1, 1], [], []>} : vector<16x256xbf16>, vector<256x128xbf16>, vector<16x128xf32> -> vector<16x128xf32>
      %c0_15 = arith.constant 0 : index
      %c0_16 = arith.constant 0 : index
      %15 = vector.load %arg6[%c0_15, %c0_16] : memref<1x128xf32, #tpu.memory_space<vmem>>, vector<1x128xf32>
      %16 = vector.broadcast %15 : vector<1x128xf32> to vector<16x128xf32>
      %17 = arith.addf %14, %16 : vector<16x128xf32>
      %c0_17 = arith.constant 0 : index
      %c0_18 = arith.constant 0 : index
      %18 = vector.load %arg8[%c0_17, %c0_18] : memref<16x128xf32, #tpu.memory_space<vmem>>, vector<16x128xf32>
      tpu.vector_store %arg8[%c0_17, %c0_18], %17 {strides = array<i32>} : memref<16x128xf32, #tpu.memory_space<vmem>>, vector<16x128xf32>,
    } else {
    }
    %c0 = arith.constant 0 : index
    %c0_1 = arith.constant 0 : index
    %3 = vector.load %arg8[%c0, %c0_1] : memref<16x128xf32, #tpu.memory_space<vmem>>, vector<16x128xf32>
    %c0_2 = arith.constant 0 : index
    %c0_3 = arith.constant 0 : index
    %4 = vector.load %arg2[%c0_2, %c0_3] : memref<16x128xbf16, #tpu.memory_space<vmem>>, vector<16x128xbf16>
    %c0_4 = arith.constant 0 : index
    %c0_5 = arith.constant 0 : index
    %5 = vector.load %arg3[%c0_4, %c0_5] : memref<128x128xbf16, #tpu.memory_space<vmem>>, vector<128x128xbf16>
    %cst = arith.constant dense<0.000000e+00> : vector<16x128xf32>
    %6 = tpu.matmul %4, %5, %cst {dimension_numbers = #tpu.dot_dimension_numbers<[1], [0], [0], [1], [0, 0, 1, 1], [], []>} : vector<16x128xbf16>, vector<128x128xbf16>, vector<16x128xf32> -> vector<16x128xf32>
    %7 = arith.addf %3, %6 : vector<16x128xf32>
    %c0_6 = arith.constant 0 : index
    %c0_7 = arith.constant 0 : index
    %8 = vector.load %arg8[%c0_6, %c0_7] : memref<16x128xf32, #tpu.memory_space<vmem>>, vector<16x128xf32>
    tpu.vector_store %arg8[%c0_6, %c0_7], %7 {strides = array<i32>} : memref<16x128xf32, #tpu.memory_space<vmem>>, vector<16x128xf32>,
    %c0_i32_8 = arith.constant 0 : i32
    %9 = arith.cmpi eq, %arg1, %c0_i32_8 : i32
    %10 = arith.extui %9 : i1 to i32
    %c0_i32_9 = arith.constant 0 : i32
    %11 = arith.cmpi ne, %10, %c0_i32_9 : i32
    scf.if %11 {
      %c0_10 = arith.constant 0 : index
      %c0_11 = arith.constant 0 : index
      %12 = vector.load %arg8[%c0_10, %c0_11] : memref<16x128xf32, #tpu.memory_space<vmem>>, vector<16x128xf32>
      %cst_12 = arith.constant 0.000000e+00 : f32
      %13 = vector.broadcast %cst_12 : f32 to vector<16x128xf32>
      %14 = arith.maximumf %12, %13 : vector<16x128xf32>
      %15 = arith.truncf %14 : vector<16x128xf32> to vector<16x128xbf16>
      %c0_13 = arith.constant 0 : index
      %c0_14 = arith.constant 0 : index
      %16 = vector.load %arg7[%c0_13, %c0_14] : memref<16x128xbf16, #tpu.memory_space<vmem>>, vector<16x128xbf16>
      tpu.vector_store %arg7[%c0_13, %c0_14], %15 {strides = array<i32>} : memref<16x128xbf16, #tpu.memory_space<vmem>>, vector<16x128xbf16>,
    } else {
    }
    return
  }
  func.func @transform_0(%arg0: i32, %arg1: i32) -> (i32, i32) {
    %c0_i32 = arith.constant 0 : i32
    return %arg0, %arg1 : i32, i32
  }
  func.func @transform_1(%arg0: i32, %arg1: i32) -> (i32, i32) {
    %c0_i32 = arith.constant 0 : i32
    %c0_i32_0 = arith.constant 0 : i32
    return %arg1, %c0_i32 : i32, i32
  }
  func.func @transform_2(%arg0: i32, %arg1: i32) -> (i32, i32) {
    %c0_i32 = arith.constant 0 : i32
    %c0_i32_0 = arith.constant 0 : i32
    return %arg0, %c0_i32 : i32, i32
  }
  func.func @transform_3(%arg0: i32, %arg1: i32) -> (i32, i32) {
    %c0_i32 = arith.constant 0 : i32
    %c0_i32_0 = arith.constant 0 : i32
    %c0_i32_1 = arith.constant 0 : i32
    return %c0_i32, %c0_i32_0 : i32, i32
  }
  func.func @transform_4(%arg0: i32, %arg1: i32) -> (i32, i32) {
    %c0_i32 = arith.constant 0 : i32
    %c0_i32_0 = arith.constant 0 : i32
    %c0_i32_1 = arith.constant 0 : i32
    return %c0_i32, %c0_i32_0 : i32, i32
  }
  func.func @transform_5(%arg0: i32, %arg1: i32) -> (i32, i32) {
    %c0_i32 = arith.constant 0 : i32
    %c0_i32_0 = arith.constant 0 : i32
    return %arg0, %c0_i32 : i32, i32
  }
}

</mosaic_0001>

<llo_original>
// kernel: tpu_custom_call.1
$region0: #{tpu_custom_call.1}
  #allocation0 [shape = 'u32[]', space=smem, size = 0x4, offset = 0x4, fixed_abs, tag = 'smem constant byte address 0x4 - core index']
  #allocation1 [shape = 'u32[144,128]{1,0:T(1,128)}', space=vmem, size = 0x12000, scoped, tag = 'internal scratch']
  #allocation2 [shape = 'f32[16,128]{1,0:T(8,128)}', space=vmem, size = 0x2000, scoped, tag = 'scratch operand']
  %s0 = inlined_call_operand.hbm [shape: bf16[32,128], index: 0, kind: input, shape index: {}]
  %s1 = inlined_call_operand.hbm [shape: bf16[128,128], index: 1, kind: input, shape index: {}]
  %s2 = inlined_call_operand.hbm [shape: bf16[128,256], index: 2, kind: input, shape index: {}]
  %s3 = inlined_call_operand.hbm [shape: bf16[256,128], index: 3, kind: input, shape index: {}]
  %s4 = inlined_call_operand.vmem [shape: f32[1,128], index: 4, kind: input, shape index: {}]
  %s5 = inlined_call_operand.hbm [shape: bf16[32,128], index: 5, kind: output, shape index: {}]
  %s6 = sld [smem:[#allocation0]]
  $region77: #{tpu_custom_call.1} parent=0
    _
  %s8 = ssub.s32 1, %s6
  %s9 = scalar_select 0, %s8, %s6
  $region1: #{tpu_custom_call.1} parent=0
    #allocation3 [shape = 'u8[8192]{0}', space=vmem, size = 0x2000, scoped, tag = 'input window, operand 0']
    #allocation4 [shape = 's32[2]{0}', space=sflag, size = 0x8, scoped, tag = 'scoped memory for tpu_custom_call.1']
    #allocation5 [shape = 's32[2]{0}', space=sflag, size = 0x8, scoped, tag = 'scoped memory for tpu_custom_call.1']
    #allocation6 [shape = 'u8[32768]{0}', space=vmem, size = 0x8000, scoped, tag = 'input window, operand 1, single buffered']
    #allocation7 [shape = 's32[1]{0}', space=sflag, size = 0x4, scoped, tag = 'scoped memory for tpu_custom_call.1']
    #allocation8 [shape = 'u8[16384]{0}', space=vmem, size = 0x4000, scoped, tag = 'input window, operand 2']
    #allocation9 [shape = 'u8[65536]{0}', space=vmem, size = 0x10000, scoped, tag = 'input window, operand 3, single buffered']
    #allocation10 [shape = 'u8[8192]{0}', space=vmem, size = 0x2000, scoped, tag = 'output window, operand 0']
    %10 = vsyncpa [#allocation4], 0
    %s11 = scalar_lea.sflag [#allocation4], 1
    %12 = vsyncpa %s11, 0
    %13 = vsyncpa [#allocation7], 0
    %14 = vsyncpa [#allocation5], 0
    %s15 = scalar_lea.sflag [#allocation5], 1
    %16 = vsyncpa %s15, 0
    loop: start=0, step=1, limit=4
    $region2: #{tpu_custom_call.1} parent=1 // loop_pre_header
      _
    $region3: #{tpu_custom_call.1} parent=1 // loop_header
      %s18 = sphi 0, %s22
      %p19 = scmp.ge.s32.totalorder %s18, 4
      %s25 = sphi 0, %s37
      %s26 = sphi 0, %s33
      %s27 = sphi 0, %s25
      %s28 = sphi 0, %s26
      %s29 = sphi 0, %s27
      %s30 = sphi 0, %s28
      %s42 = sphi 0, %s44
      %s45 = sphi 0, %s42
      %s46 = sphi 0, %s45
      %s62 = sphi 0, %s46
      %s68 = sphi 0, %s70
      %s71 = sphi 0, %s68
      %s72 = sphi 0, %s71
      %s88 = sphi 0, %s72
      %s94 = sphi 0, %s96
      %s97 = sphi 0, %s94
      %s98 = sphi 0, %s97
      %s114 = sphi 0, %s98
      %s118 = sphi 0, %s118
      %s120 = sphi 0, %s118
      %s121 = sphi 0, %s120
      %s135 = sphi 0, %s121
      %s139 = sphi 0, %s139
      %s141 = sphi 0, %s139
      %s142 = sphi 0, %s141
      %s156 = sphi 0, %s142
      %s162 = sphi 0, %s164
      %s165 = sphi 0, %s162
      %s166 = sphi 0, %s165
      %s182 = sphi 0, %s166
    $region4: #{tpu_custom_call.1} parent=1 // loop_header_branch
      %21 = sbr.rel (%p19) target = $region8
    $region5: #{tpu_custom_call.1} parent=1 // loop_body
      %s23 = ssub.s32 %s18, 1
      %s24 = ssub.s32 %s18, 2
      %s31 = sadd.s32 1, %s26
      %p32 = scmp.ge.s32.totalorder %s31, 1
      %s33 = scalar_select %p32, 0, %s31
      %s34 = sadd.s32 1, %s25
      %s35 = scalar_select %p32, %s34, %s25
      %p36 = scmp.ge.s32.totalorder %s35, 2
      %s37 = scalar_select %p36, 0, %s35
      %s38 = ssub.s32 %s25, %s37
      %s39 = ssub.s32 %s26, %s33
      %s40 = sor.u32 %s38, %s39
      %p41 = scmp.eq.s32.totalorder %s40, 0
      %s43 = sadd.s32 %s42, 1
      %s44 = scalar_select %p41, %s42, %s43
      %p47 = pneg %p41
      %p48 = scmp.eq.s32.totalorder %s18, 1
      %p49 = por %p47, %p48
      %p50 = scmp.ne.s32.totalorder %s42, %s45
      %p51 = scmp.eq.s32.totalorder %s18, 0
      %p52 = por %p50, %p51
      %p53 = scmp.ne.s32.totalorder %s42, %s45
      %p54 = scmp.eq.s32.totalorder %s23, 1
      %p55 = por %p53, %p54
      %p56 = scmp.ne.s32.totalorder %s45, %s46
      %p57 = scmp.eq.s32.totalorder %s23, 0
      %p58 = por %p56, %p57
      %p59 = scmp.ne.s32.totalorder %s45, %s46
      %p60 = scmp.eq.s32.totalorder %s24, 1
      %p61 = por %p59, %p60
      %p63 = scmp.ne.s32.totalorder %s46, %s62
      %p64 = scmp.eq.s32.totalorder %s24, 0
      %p65 = por %p63, %p64
      %s66 = ssub.s32 %s26, %s33
      %p67 = scmp.eq.s32.totalorder %s66, 0
      %s69 = sadd.s32 %s68, 1
      %s70 = scalar_select %p67, %s68, %s69
      %p73 = pneg %p67
      %p74 = scmp.eq.s32.totalorder %s18, 1
      %p75 = por %p73, %p74
      %p76 = scmp.ne.s32.totalorder %s68, %s71
      %p77 = scmp.eq.s32.totalorder %s18, 0
      %p78 = por %p76, %p77
      %p79 = scmp.ne.s32.totalorder %s68, %s71
      %p80 = scmp.eq.s32.totalorder %s23, 1
      %p81 = por %p79, %p80
      %p82 = scmp.ne.s32.totalorder %s71, %s72
      %p83 = scmp.eq.s32.totalorder %s23, 0
      %p84 = por %p82, %p83
      %p85 = scmp.ne.s32.totalorder %s71, %s72
      %p86 = scmp.eq.s32.totalorder %s24, 1
      %p87 = por %p85, %p86
      %p89 = scmp.ne.s32.totalorder %s72, %s88
      %p90 = scmp.eq.s32.totalorder %s24, 0
      %p91 = por %p89, %p90
      %s92 = ssub.s32 %s25, %s37
      %p93 = scmp.eq.s32.totalorder %s92, 0
      %s95 = sadd.s32 %s94, 1
      %s96 = scalar_select %p93, %s94, %s95
      %p99 = pneg %p93
      %p100 = scmp.eq.s32.totalorder %s18, 1
      %p101 = por %p99, %p100
      %p102 = scmp.ne.s32.totalorder %s94, %s97
      %p103 = scmp.eq.s32.totalorder %s18, 0
      %p104 = por %p102, %p103
      %p105 = scmp.ne.s32.totalorder %s94, %s97
      %p106 = scmp.eq.s32.totalorder %s23, 1
      %p107 = por %p105, %p106
      %p108 = scmp.ne.s32.totalorder %s97, %s98
      %p109 = scmp.eq.s32.totalorder %s23, 0
      %p110 = por %p108, %p109
      %p111 = scmp.ne.s32.totalorder %s97, %s98
      %p112 = scmp.eq.s32.totalorder %s24, 1
      %p113 = por %p111, %p112
      %p115 = scmp.ne.s32.totalorder %s98, %s114
      %p116 = scmp.eq.s32.totalorder %s24, 0
      %p117 = por %p115, %p116
      %s119 = sadd.s32 %s118, 1
      %p122 = scmp.eq.s32.totalorder %s18, 1
      %p123 = scmp.ne.s32.totalorder %s118, %s120
      %p124 = scmp.eq.s32.totalorder %s18, 0
      %p125 = por %p123, %p124
      %p126 = scmp.ne.s32.totalorder %s118, %s120
      %p127 = scmp.eq.s32.totalorder %s23, 1
      %p128 = por %p126, %p127
      %p129 = scmp.ne.s32.totalorder %s120, %s121
      %p130 = scmp.eq.s32.totalorder %s23, 0
      %p131 = por %p129, %p130
      %p132 = scmp.ne.s32.totalorder %s120, %s121
      %p133 = scmp.eq.s32.totalorder %s24, 1
      %p134 = por %p132, %p133
      %p136 = scmp.ne.s32.totalorder %s121, %s135
      %p137 = scmp.eq.s32.totalorder %s24, 0
      %p138 = por %p136, %p137
      %s140 = sadd.s32 %s139, 1
      %p143 = scmp.eq.s32.totalorder %s18, 1
      %p144 = scmp.ne.s32.totalorder %s139, %s141
      %p145 = scmp.eq.s32.totalorder %s18, 0
      %p146 = por %p144, %p145
      %p147 = scmp.ne.s32.totalorder %s139, %s141
      %p148 = scmp.eq.s32.totalorder %s23, 1
      %p149 = por %p147, %p148
      %p150 = scmp.ne.s32.totalorder %s141, %s142
      %p151 = scmp.eq.s32.totalorder %s23, 0
      %p152 = por %p150, %p151
      %p153 = scmp.ne.s32.totalorder %s141, %s142
      %p154 = scmp.eq.s32.totalorder %s24, 1
      %p155 = por %p153, %p154
      %p157 = scmp.ne.s32.totalorder %s142, %s156
      %p158 = scmp.eq.s32.totalorder %s24, 0
      %p159 = por %p157, %p158
      %s160 = ssub.s32 %s25, %s37
      %p161 = scmp.eq.s32.totalorder %s160, 0
      %s163 = sadd.s32 %s162, 1
      %s164 = scalar_select %p161, %s162, %s163
      %p167 = pneg %p161
      %p168 = scmp.eq.s32.totalorder %s18, 1
      %p169 = por %p167, %p168
      %p170 = scmp.ne.s32.totalorder %s162, %s165
      %p171 = scmp.eq.s32.totalorder %s18, 0
      %p172 = por %p170, %p171
      %p173 = scmp.ne.s32.totalorder %s162, %s165
      %p174 = scmp.eq.s32.totalorder %s23, 1
      %p175 = por %p173, %p174
      %p176 = scmp.ne.s32.totalorder %s165, %s166
      %p177 = scmp.eq.s32.totalorder %s23, 0
      %p178 = por %p176, %p177
      %p179 = scmp.ne.s32.totalorder %s165, %s166
      %p180 = scmp.eq.s32.totalorder %s24, 1
      %p181 = por %p179, %p180
      %p183 = scmp.ne.s32.totalorder %s166, %s182
      %p184 = scmp.eq.s32.totalorder %s24, 0
      %p185 = por %p183, %p184
      %p186 = scmp.le.s32.totalorder 1, %s18
      %p187 = scmp.lt.s32.totalorder %s18, 3
      %p188 = pnand %p186, %p187
      %p189 = pneg %p188
      // Predicated region
      $region9: #{tpu_custom_call.1} parent=5 // pred_check
        _
      $region10: #{tpu_custom_call.1} parent=5 // pred_check_branch
        %191 = sbr.rel (%p188) target = $region12
      $region11: #{tpu_custom_call.1} parent=5 // pred_region
        %s192 = ssub.s32 %s18, 1
        // Predicated region
        $region13: #{tpu_custom_call.1} parent=11 // pred_check
          %p193 = pneg %p84
        $region14: #{tpu_custom_call.1} parent=11 // pred_check_branch
          %195 = sbr.rel (%p193) target = $region16
        $region15: #{tpu_custom_call.1} parent=11 // pred_region
          %s196 = smul.u32 16, %s28
          %s198 = ssub.s32 1024, 1024
          %199 = vsyncadd [#allocation7], %s198
          %s200 = smul.addr %s196, 64
          %s201 = scalar_lea.hbm %s1, %s200
          %s202 = sshll.u32 [#allocation6], 4
          %s203 = int_to_ptr.vmem [resolvable:$true] %s202
          %208 = dma.hbm_to_vmem [thread:$0]  %s201, 1024, %s203, [#allocation7], 64, 64, 4
        $region16: #{tpu_custom_call.1} parent=11 // pred_fallthru
          _
        // Predicated region
        $region17: #{tpu_custom_call.1} parent=11 // pred_check
          %p209 = pneg %p131
        $region18: #{tpu_custom_call.1} parent=11 // pred_check_branch
          %211 = sbr.rel (%p209) target = $region20
        $region19: #{tpu_custom_call.1} parent=11 // pred_region
          %s213 = ssub.s32 2048, 2048
          %214 = vsyncadd [#allocation7], %s213
          %s215 = sshll.u32 [#allocation9], 4
          %s216 = int_to_ptr.vmem [resolvable:$true] %s215
          %221 = dma.hbm_to_vmem [thread:$0]  %s3, 2048, %s216, [#allocation7], 64, 64, 4
        $region20: #{tpu_custom_call.1} parent=11 // pred_fallthru
          _
        // Predicated region
        $region21: #{tpu_custom_call.1} parent=11 // pred_check
          %p222 = pneg %p152
        $region22: #{tpu_custom_call.1} parent=11 // pred_check_branch
          %224 = sbr.rel (%p222) target = $region24
        $region23: #{tpu_custom_call.1} parent=11 // pred_region
          _
        $region24: #{tpu_custom_call.1} parent=11 // pred_fallthru
          _
      $region12: #{tpu_custom_call.1} parent=5 // pred_fallthru
        _
      %p225 = scmp.lt.s32.totalorder %s18, 2
      // Predicated region
      $region25: #{tpu_custom_call.1} parent=5 // pred_check
        %p226 = pneg %p225
      $region26: #{tpu_custom_call.1} parent=5 // pred_check_branch
        %228 = sbr.rel (%p226) target = $region28
      $region27: #{tpu_custom_call.1} parent=5 // pred_region
        // Predicated region
        $region29: #{tpu_custom_call.1} parent=27 // pred_check
          %p229 = pneg %p52
        $region30: #{tpu_custom_call.1} parent=27 // pred_check_branch
          %231 = sbr.rel (%p229) target = $region32
        $region31: #{tpu_custom_call.1} parent=27 // pred_region
          %s232 = sand.u32 %s18, 1
          %s233 = scalar_lea.sflag [#allocation4], %s232
          %s234 = sand.u32 %s42, 1
          %s235 = smul.addr %s234, 8
          %s236 = scalar_lea.vmem [#allocation3], %s235
          %s237 = smul.u32 2, %s25
          %s239 = ssub.s32 128, 128
          %240 = vsyncadd %s233, %s239
          %s241 = sadd.s32 %s26, %s237
          %s242 = smul.addr %s241, 64
          %s243 = scalar_lea.hbm %s0, %s242
          %s244 = sshll.u32 %s236, 4
          %s245 = int_to_ptr.vmem [resolvable:$true] %s244
          %250 = dma.hbm_to_vmem [thread:$0]  %s243, 128, %s245, %s233, 64, 64, 4
        $region32: #{tpu_custom_call.1} parent=27 // pred_fallthru
          _
        // Predicated region
        $region33: #{tpu_custom_call.1} parent=27 // pred_check
          %p251 = pneg %p104
        $region34: #{tpu_custom_call.1} parent=27 // pred_check_branch
          %253 = sbr.rel (%p251) target = $region36
        $region35: #{tpu_custom_call.1} parent=27 // pred_region
          %s254 = sand.u32 %s18, 1
          %s255 = scalar_lea.sflag [#allocation4], %s254
          %s256 = sand.u32 %s94, 1
          %s257 = smul.addr %s256, 16
          %s258 = scalar_lea.vmem [#allocation8], %s257
          %s259 = smul.u32 2, %s25
          %s261 = ssub.s32 256, 256
          %262 = vsyncadd %s255, %s261
          %s263 = smul.addr %s259, 2
          %s264 = smul.addr %s263, 64
          %s265 = scalar_lea.hbm %s2, %s264
          %s266 = sshll.u32 %s258, 4
          %s267 = int_to_ptr.vmem [resolvable:$true] %s266
          %272 = dma.hbm_to_vmem [thread:$0]  %s265, 256, %s267, %s255, 128, 128, 8
        $region36: #{tpu_custom_call.1} parent=27 // pred_fallthru
          _
      $region28: #{tpu_custom_call.1} parent=5 // pred_fallthru
        _
      %p273 = scmp.le.s32.totalorder 1, %s18
      %p274 = scmp.lt.s32.totalorder %s18, 3
      %p275 = pnand %p273, %p274
      %p276 = pneg %p275
      // Predicated region
      $region37: #{tpu_custom_call.1} parent=5 // pred_check
        _
      $region38: #{tpu_custom_call.1} parent=5 // pred_check_branch
        %278 = sbr.rel (%p275) target = $region40
      $region39: #{tpu_custom_call.1} parent=5 // pred_region
        %s279 = ssub.s32 %s18, 1
        %s280 = sand.u32 %s23, 1
        %s281 = scalar_lea.sflag [#allocation4], %s280
        %s282 = sand.u32 %s45, 1
        %s283 = smul.addr %s282, 8
        %s284 = scalar_lea.vmem [#allocation3], %s283
        // Predicated region
        $region41: #{tpu_custom_call.1} parent=39 // pred_check
          %p285 = pneg %p58
        $region42: #{tpu_custom_call.1} parent=39 // pred_check_branch
          %287 = sbr.rel (%p285) target = $region44
        $region43: #{tpu_custom_call.1} parent=39 // pred_region
          %288 = dma.done %s281, 128
        $region44: #{tpu_custom_call.1} parent=39 // pred_fallthru
          _
        // Predicated region
        $region45: #{tpu_custom_call.1} parent=39 // pred_check
          %p289 = pneg %p84
        $region46: #{tpu_custom_call.1} parent=39 // pred_check_branch
          %291 = sbr.rel (%p289) target = $region48
        $region47: #{tpu_custom_call.1} parent=39 // pred_region
          %292 = dma.done [#allocation7], 1024
        $region48: #{tpu_custom_call.1} parent=39 // pred_fallthru
          _
        %s293 = sand.u32 %s23, 1
        %s294 = scalar_lea.sflag [#allocation4], %s293
        %s295 = sand.u32 %s97, 1
        %s296 = smul.addr %s295, 16
        %s297 = scalar_lea.vmem [#allocation8], %s296
        // Predicated region
        $region49: #{tpu_custom_call.1} parent=39 // pred_check
          %p298 = pneg %p110
        $region50: #{tpu_custom_call.1} parent=39 // pred_check_branch
          %300 = sbr.rel (%p298) target = $region52
        $region51: #{tpu_custom_call.1} parent=39 // pred_region
          %301 = dma.done %s294, 256
        $region52: #{tpu_custom_call.1} parent=39 // pred_fallthru
          _
        // Predicated region
        $region53: #{tpu_custom_call.1} parent=39 // pred_check
          %p302 = pneg %p131
        $region54: #{tpu_custom_call.1} parent=39 // pred_check_branch
          %304 = sbr.rel (%p302) target = $region56
        $region55: #{tpu_custom_call.1} parent=39 // pred_region
          %305 = dma.done [#allocation7], 2048
        $region56: #{tpu_custom_call.1} parent=39 // pred_fallthru
          _
        %s306 = sand.u32 %s23, 1
        %s307 = scalar_lea.sflag [#allocation4], %s306
        %s308 = sand.u32 %s45, 1
        %s309 = smul.addr %s308, 8
        %s310 = scalar_lea.vmem [#allocation3], %s309
        %p311 = pneg %p58
        %p312 = pneg %p55
        %p313 = pneg %p84
        %p314 = pneg %p81
        %s315 = sand.u32 %s23, 1
        %s316 = scalar_lea.sflag [#allocation4], %s315
        %s317 = sand.u32 %s97, 1
        %s318 = smul.addr %s317, 16
        %s319 = scalar_lea.vmem [#allocation8], %s318
        %p320 = pneg %p110
        %p321 = pneg %p107
        %p322 = pneg %p131
        %p323 = pneg %p128
        %p324 = pneg %p152
        %p325 = pneg %p149
        %p326 = pneg %p178
        %p327 = pneg %p175
        %s328 = sand.u32 %s165, 1
        %s329 = scalar_lea.sflag [#allocation5], %s328
        %s330 = sand.u32 %s165, 1
        %s331 = smul.addr %s330, 8
        %s332 = scalar_lea.vmem [#allocation10], %s331
        %s333 = smul.u32 2, %s27
        %s334 = smul.u32 16, %s28
        %s335 = smul.u32 2, %s27
        %s336 = smul.u32 2, %s27
        %p338 = scmp.eq.s32.totalorder %s28, 0
        // Predicated region
        $region57: #{tpu_custom_call.1} parent=39 // pred_check
          %p339 = pneg %p338
        $region58: #{tpu_custom_call.1} parent=39 // pred_check_branch
          %341 = sbr.rel (%p339) target = $region60
        $region59: #{tpu_custom_call.1} parent=39 // pred_region
          %v342 = vld [vmem:[%s297] sm:$0xff]
          %v343 = vld [vmem:[%s297 + $0x8] sm:$0xff]
          %v344 = vld [vmem:[#allocation9] sm:$0xf]
          %v345 = vld [vmem:[#allocation9 + $0x4] sm:$0xf]
          %v346 = vld [vmem:[#allocation9 + $0x8] sm:$0xf]
          %v347 = vld [vmem:[#allocation9 + $0xc] sm:$0xf]
          %v348 = vld [vmem:[#allocation9 + $0x10] sm:$0xf]
          %v349 = vld [vmem:[#allocation9 + $0x14] sm:$0xf]
          %v350 = vld [vmem:[#allocation9 + $0x18] sm:$0xf]
          %v351 = vld [vmem:[#allocation9 + $0x1c] sm:$0xf]
          %v352 = vld [vmem:[#allocation9 + $0x20] sm:$0xf]
          %v353 = vld [vmem:[#allocation9 + $0x24] sm:$0xf]
          %v354 = vld [vmem:[#allocation9 + $0x28] sm:$0xf]
          %v355 = vld [vmem:[#allocation9 + $0x2c] sm:$0xf]
          %v356 = vld [vmem:[#allocation9 + $0x30] sm:$0xf]
          %v357 = vld [vmem:[#allocation9 + $0x34] sm:$0xf]
          %v358 = vld [vmem:[#allocation9 + $0x38] sm:$0xf]
          %v359 = vld [vmem:[#allocation9 + $0x3c] sm:$0xf]
          %v360 = vld [vmem:[#allocation9 + $0x40] sm:$0xf]
          %v361 = vld [vmem:[#allocation9 + $0x44] sm:$0xf]
          %v362 = vld [vmem:[#allocation9 + $0x48] sm:$0xf]
          %v363 = vld [vmem:[#allocation9 + $0x4c] sm:$0xf]
          %v364 = vld [vmem:[#allocation9 + $0x50] sm:$0xf]
          %v365 = vld [vmem:[#allocation9 + $0x54] sm:$0xf]
          %v366 = vld [vmem:[#allocation9 + $0x58] sm:$0xf]
          %v367 = vld [vmem:[#allocation9 + $0x5c] sm:$0xf]
          %v368 = vld [vmem:[#allocation9 + $0x60] sm:$0xf]
          %v369 = vld [vmem:[#allocation9 + $0x64] sm:$0xf]
          %v370 = vld [vmem:[#allocation9 + $0x68] sm:$0xf]
          %v371 = vld [vmem:[#allocation9 + $0x6c] sm:$0xf]
          %v372 = vld [vmem:[#allocation9 + $0x70] sm:$0xf]
          %v373 = vld [vmem:[#allocation9 + $0x74] sm:$0xf]
          %v374 = vld [vmem:[#allocation9 + $0x78] sm:$0xf]
          %v375 = vld [vmem:[#allocation9 + $0x7c] sm:$0xf]
          %v376 = vld [vmem:[%s4] sm:$0x1]
          %v378 = vlaneseq
          %v379 = vshrl.u32 %v378, 7
          %v380 = vsub.s32 0, %v379
          %v381 = vrot.slane %v376, %v380
          %v385 = vunpack.c.l.b16 %v342
          %v386 = vunpack.c.h.b16 %v342
          %v387 = vunpack.c.l.b16 %v343
          %v388 = vunpack.c.h.b16 %v343
          %v389 = vpack.c.b16 %v387, %v385
          %v390 = vpack.c.b16 %v388, %v386
          %v425 = vunpack.c.l.b16 %v344
          %v426 = vunpack.c.l.b16 %v345
          %v427 = vunpack.c.l.b16 %v346
          %v428 = vunpack.c.l.b16 %v347
          %v429 = vunpack.c.l.b16 %v348
          %v430 = vunpack.c.l.b16 %v349
          %v431 = vunpack.c.l.b16 %v350
          %v432 = vunpack.c.l.b16 %v351
          %v433 = vunpack.c.l.b16 %v352
          %v434 = vunpack.c.l.b16 %v353
          %v435 = vunpack.c.l.b16 %v354
          %v436 = vunpack.c.l.b16 %v355
          %v437 = vunpack.c.l.b16 %v356
          %v438 = vunpack.c.l.b16 %v357
          %v439 = vunpack.c.l.b16 %v358
          %v440 = vunpack.c.l.b16 %v359
          %v441 = vunpack.c.l.b16 %v360
          %v442 = vunpack.c.l.b16 %v361
          %v443 = vunpack.c.l.b16 %v362
          %v444 = vunpack.c.l.b16 %v363
          %v445 = vunpack.c.l.b16 %v364
          %v446 = vunpack.c.l.b16 %v365
          %v447 = vunpack.c.l.b16 %v366
          %v448 = vunpack.c.l.b16 %v367
          %v449 = vunpack.c.l.b16 %v368
          %v450 = vunpack.c.l.b16 %v369
          %v451 = vunpack.c.l.b16 %v370
          %v452 = vunpack.c.l.b16 %v371
          %v453 = vunpack.c.l.b16 %v372
          %v454 = vunpack.c.l.b16 %v373
          %v455 = vunpack.c.l.b16 %v374
          %v456 = vunpack.c.l.b16 %v375
          %v457 = vpack.c.b16 %v426, %v425
          %v458 = vpack.c.b16 %v428, %v427
          %v459 = vpack.c.b16 %v430, %v429
          %v460 = vpack.c.b16 %v432, %v431
          %v461 = vpack.c.b16 %v434, %v433
          %v462 = vpack.c.b16 %v436, %v435
          %v463 = vpack.c.b16 %v438, %v437
          %v464 = vpack.c.b16 %v440, %v439
          %v465 = vpack.c.b16 %v442, %v441
          %v466 = vpack.c.b16 %v444, %v443
          %v467 = vpack.c.b16 %v446, %v445
          %v468 = vpack.c.b16 %v448, %v447
          %v469 = vpack.c.b16 %v450, %v449
          %v470 = vpack.c.b16 %v452, %v451
          %v471 = vpack.c.b16 %v454, %v453
          %v472 = vpack.c.b16 %v456, %v455
          %489 = vmatprep.subr.bf16.mxu0 0
          %490 = vmatpush1.bf16.msra.mxu0 %v464
          %491 = vmatprep.subr.bf16.mxu0 0
          %492 = vmatpush1.bf16.msra.mxu0 %v463
          %493 = vmatprep.subr.bf16.mxu0 0
          %494 = vmatpush1.bf16.msra.mxu0 %v462
          %495 = vmatprep.subr.bf16.mxu0 0
          %496 = vmatpush1.bf16.msra.mxu0 %v461
          %497 = vmatprep.subr.bf16.mxu0 0
          %498 = vmatpush1.bf16.msra.mxu0 %v460
          %499 = vmatprep.subr.bf16.mxu0 0
          %500 = vmatpush1.bf16.msra.mxu0 %v459
          %501 = vmatprep.subr.bf16.mxu0 0
          %502 = vmatpush1.bf16.msra.mxu0 %v458
          %503 = vmatprep.subr.bf16.mxu0 0
          %504 = vmatpush1.bf16.msra.mxu0 %v457
          %505 = vmatprep.subr.bf16.mxu0 0
          %506 = vmatpush2.bf16.msra.mxu0 %v472
          %507 = vmatprep.subr.bf16.mxu0 0
          %508 = vmatpush2.bf16.msra.mxu0 %v471
          %509 = vmatprep.subr.bf16.mxu0 0
          %510 = vmatpush2.bf16.msra.mxu0 %v470
          %511 = vmatprep.subr.bf16.mxu0 0
          %512 = vmatpush2.bf16.msra.mxu0 %v469
          %513 = vmatprep.subr.bf16.mxu0 0
          %514 = vmatpush2.bf16.msra.mxu0 %v468
          %515 = vmatprep.subr.bf16.mxu0 0
          %516 = vmatpush2.bf16.msra.mxu0 %v467
          %517 = vmatprep.subr.bf16.mxu0 0
          %518 = vmatpush2.bf16.msra.mxu0 %v466
          %519 = vmatprep.subr.bf16.mxu0 0
          %520 = vmatpush2.bf16.msra.mxu0 %v465
          %521 = vmatprep.mubr.bf16.mxu0 %v390
          %522 = vmatmul.mubr.bf16.gmra.mxu0 %v389
          %v523 = vpop.f32.mrf.mxu0
          %v524 = vadd.f32 %v381, %v523
          %v525 = vpop.f32.mrf.mxu0
          %v526 = vpop.f32.mrf.mxu0
          %v527 = vadd.f32 %v381, %v526
          %v528 = vpop.f32.mrf.mxu0
          %529 = vdwg.mxu0
          %530 = vst [vmem:[#allocation2] sm:$0xff] %v524
          %531 = vst [vmem:[#allocation2 + $0x8] sm:$0xff] %v527
        $region60: #{tpu_custom_call.1} parent=39 // pred_fallthru
          _
        %v532 = vld [vmem:[#allocation2] sm:$0xff]
        %v533 = vld [vmem:[#allocation2 + $0x8] sm:$0xff]
        %v534 = vld [vmem:[%s284] sm:$0xf]
        %v535 = vld [vmem:[%s284 + $0x4] sm:$0xf]
        %v536 = vld [vmem:[#allocation6] sm:$0xf]
        %v537 = vld [vmem:[#allocation6 + $0x4] sm:$0xf]
        %v538 = vld [vmem:[#allocation6 + $0x8] sm:$0xf]
        %v539 = vld [vmem:[#allocation6 + $0xc] sm:$0xf]
        %v540 = vld [vmem:[#allocation6 + $0x10] sm:$0xf]
        %v541 = vld [vmem:[#allocation6 + $0x14] sm:$0xf]
        %v542 = vld [vmem:[#allocation6 + $0x18] sm:$0xf]
        %v543 = vld [vmem:[#allocation6 + $0x1c] sm:$0xf]
        %v544 = vld [vmem:[#allocation6 + $0x20] sm:$0xf]
        %v545 = vld [vmem:[#allocation6 + $0x24] sm:$0xf]
        %v546 = vld [vmem:[#allocation6 + $0x28] sm:$0xf]
        %v547 = vld [vmem:[#allocation6 + $0x2c] sm:$0xf]
        %v548 = vld [vmem:[#allocation6 + $0x30] sm:$0xf]
        %v549 = vld [vmem:[#allocation6 + $0x34] sm:$0xf]
        %v550 = vld [vmem:[#allocation6 + $0x38] sm:$0xf]
        %v551 = vld [vmem:[#allocation6 + $0x3c] sm:$0xf]
        %v554 = vunpack.c.l.b16 %v534
        %v555 = vunpack.c.l.b16 %v535
        %v556 = vpack.c.b16 %v555, %v554
        %v574 = vunpack.c.l.b16 %v536
        %v575 = vunpack.c.l.b16 %v537
        %v576 = vunpack.c.l.b16 %v538
        %v577 = vunpack.c.l.b16 %v539
        %v578 = vunpack.c.l.b16 %v540
        %v579 = vunpack.c.l.b16 %v541
        %v580 = vunpack.c.l.b16 %v542
        %v581 = vunpack.c.l.b16 %v543
        %v582 = vunpack.c.l.b16 %v544
        %v583 = vunpack.c.l.b16 %v545
        %v584 = vunpack.c.l.b16 %v546
        %v585 = vunpack.c.l.b16 %v547
        %v586 = vunpack.c.l.b16 %v548
        %v587 = vunpack.c.l.b16 %v549
        %v588 = vunpack.c.l.b16 %v550
        %v589 = vunpack.c.l.b16 %v551
        %v590 = vpack.c.b16 %v575, %v574
        %v591 = vpack.c.b16 %v577, %v576
        %v592 = vpack.c.b16 %v579, %v578
        %v593 = vpack.c.b16 %v581, %v580
        %v594 = vpack.c.b16 %v583, %v582
        %v595 = vpack.c.b16 %v585, %v584
        %v596 = vpack.c.b16 %v587, %v586
        %v597 = vpack.c.b16 %v589, %v588
        %606 = vmatprep.subr.bf16.mxu0 0
        %607 = vmatpush1.bf16.msra.mxu0 %v597
        %608 = vmatprep.subr.bf16.mxu0 0
        %609 = vmatpush1.bf16.msra.mxu0 %v596
        %610 = vmatprep.subr.bf16.mxu0 0
        %611 = vmatpush1.bf16.msra.mxu0 %v595
        %612 = vmatprep.subr.bf16.mxu0 0
        %613 = vmatpush1.bf16.msra.mxu0 %v594
        %614 = vmatprep.subr.bf16.mxu0 0
        %615 = vmatpush1.bf16.msra.mxu0 %v593
        %616 = vmatprep.subr.bf16.mxu0 0
        %617 = vmatpush1.bf16.msra.mxu0 %v592
        %618 = vmatprep.subr.bf16.mxu0 0
        %619 = vmatpush1.bf16.msra.mxu0 %v591
        %620 = vmatprep.subr.bf16.mxu0 0
        %621 = vmatpush1.bf16.msra.mxu0 %v590
        %622 = vmatprep.subr.bf16.mxu0 0
        %623 = vmatpush2.bf16.msra.mxu0 0
        %624 = vmatprep.subr.bf16.mxu0 0
        %625 = vmatpush2.bf16.msra.mxu0 0
        %626 = vmatprep.subr.bf16.mxu0 0
        %627 = vmatpush2.bf16.msra.mxu0 0
        %628 = vmatprep.subr.bf16.mxu0 0
        %629 = vmatpush2.bf16.msra.mxu0 0
        %630 = vmatprep.subr.bf16.mxu0 0
        %631 = vmatpush2.bf16.msra.mxu0 0
        %632 = vmatprep.subr.bf16.mxu0 0
        %633 = vmatpush2.bf16.msra.mxu0 0
        %634 = vmatprep.subr.bf16.mxu0 0
        %635 = vmatpush2.bf16.msra.mxu0 0
        %636 = vmatprep.subr.bf16.mxu0 0
        %637 = vmatpush2.bf16.msra.mxu0 0
        %638 = vmatprep.mubr.bf16.mxu0 0
        %639 = vmatmul.mubr.bf16.gmra.mxu0 %v556
        %v640 = vpop.f32.mrf.mxu0
        %v641 = vadd.f32 0.0, %v640
        %v642 = vpop.f32.mrf.mxu0
        %v643 = vpop.f32.mrf.mxu0
        %v644 = vadd.f32 0.0, %v643
        %v645 = vpop.f32.mrf.mxu0
        %646 = vdwg.mxu0
        %v647 = vadd.f32 %v532, %v641
        %v648 = vadd.f32 %v533, %v644
        %649 = vst [vmem:[#allocation2] sm:$0xff] %v647
        %650 = vst [vmem:[#allocation2 + $0x8] sm:$0xff] %v648
        // Predicated region
        $region61: #{tpu_custom_call.1} parent=39 // pred_check
          %p651 = pneg %p338
        $region62: #{tpu_custom_call.1} parent=39 // pred_check_branch
          %653 = sbr.rel (%p651) target = $region64
        $region63: #{tpu_custom_call.1} parent=39 // pred_region
          %v654 = vld [vmem:[#allocation2] sm:$0xff]
          %v655 = vld [vmem:[#allocation2 + $0x8] sm:$0xff]
          %v656 = vmax.f32 %v654, 0.0
          %v657 = vmax.f32 %v655, 0.0
          %v658 = vpack.c.bf16 %v657, %v656
          %v660 = vunpack.c.l.b16 %v658
          %v661 = vunpack.c.h.b16 %v658
          %v662 = vpack.c.b16 %v660, %v660
          %v663 = vpack.c.b16 %v661, %v661
          %666 = vst [vmem:[%s332] sm:$0xf] %v662
          %667 = vst [vmem:[%s332 + $0x4] sm:$0xf] %v663
        $region64: #{tpu_custom_call.1} parent=39 // pred_fallthru
          _
        %s668 = sand.u32 %s165, 1
        %s669 = scalar_lea.sflag [#allocation5], %s668
        %s670 = sand.u32 %s165, 1
        %s671 = smul.addr %s670, 8
        %s672 = scalar_lea.vmem [#allocation10], %s671
        // Predicated region
        $region65: #{tpu_custom_call.1} parent=39 // pred_check
          %p673 = pneg %p175
        $region66: #{tpu_custom_call.1} parent=39 // pred_check_branch
          %675 = sbr.rel (%p673) target = $region68
        $region67: #{tpu_custom_call.1} parent=39 // pred_region
          %s676 = smul.u32 2, %s27
          %s678 = ssub.s32 128, 128
          %679 = vsyncadd %s669, %s678
          %s680 = smul.addr %s676, 64
          %s681 = scalar_lea.hbm %s5, %s680
          %s682 = sshll.u32 %s672, 4
          %s683 = int_to_ptr.vmem [resolvable:$true] %s682
          %688 = dma.vmem_to_hbm [thread:$0]  %s683, 128, %s681, %s669, 64, 64, 4
        $region68: #{tpu_custom_call.1} parent=39 // pred_fallthru
          _
      $region40: #{tpu_custom_call.1} parent=5 // pred_fallthru
        _
      %p689 = scmp.le.s32.totalorder 2, %s18
      // Predicated region
      $region69: #{tpu_custom_call.1} parent=5 // pred_check
        %p690 = pneg %p689
      $region70: #{tpu_custom_call.1} parent=5 // pred_check_branch
        %692 = sbr.rel (%p690) target = $region72
      $region71: #{tpu_custom_call.1} parent=5 // pred_region
        %s693 = ssub.s32 %s18, 2
        // Predicated region
        $region73: #{tpu_custom_call.1} parent=71 // pred_check
          %p694 = pneg %p181
        $region74: #{tpu_custom_call.1} parent=71 // pred_check_branch
          %696 = sbr.rel (%p694) target = $region76
        $region75: #{tpu_custom_call.1} parent=71 // pred_region
          %s697 = sand.u32 %s166, 1
          %s698 = scalar_lea.sflag [#allocation5], %s697
          %s699 = sand.u32 %s166, 1
          %s700 = smul.addr %s699, 8
          %s701 = scalar_lea.vmem [#allocation10], %s700
          %702 = dma.done %s698, 128
        $region76: #{tpu_custom_call.1} parent=71 // pred_fallthru
          _
      $region72: #{tpu_custom_call.1} parent=5 // pred_fallthru
        _
    $region6: #{tpu_custom_call.1} parent=1 // loop_footer
      %s22 = sadd.s32 1, %s18
    $region7: #{tpu_custom_call.1} parent=1 // loop_footer_branch
      %17 = sbr.rel target = $region3
    $region8: #{tpu_custom_call.1} parent=1 // loop_exit
      _
    %703 = vsyncpa [#allocation4], 1
    %s704 = scalar_lea.sflag [#allocation4], 1
    %705 = vsyncpa %s704, 1
    %706 = vsyncpa [#allocation7], 1
    %707 = vsyncpa [#allocation5], 1
    %s708 = scalar_lea.sflag [#allocation5], 1
    %709 = vsyncpa %s708, 1

// kernel: tpu_custom_call.1
$region0: #{tpu_custom_call.1}
  #allocation0 [shape = 'u32[]', space=smem, size = 0x4, offset = 0x4, fixed_abs, tag = 'smem constant byte address 0x4 - core index']
  #allocation1 [shape = 'u32[144,128]{1,0:T(1,128)}', space=vmem, size = 0x12000, scoped, tag = 'internal scratch']
  #allocation2 [shape = 'f32[16,128]{1,0:T(8,128)}', space=vmem, size = 0x2000, scoped, tag = 'scratch operand']
  %s0 = inlined_call_operand.hbm [shape: bf16[32,128], index: 0, kind: input, shape index: {}]
  %s1 = inlined_call_operand.hbm [shape: bf16[128,128], index: 1, kind: input, shape index: {}]
  %s2 = inlined_call_operand.hbm [shape: bf16[128,256], index: 2, kind: input, shape index: {}]
  %s3 = inlined_call_operand.hbm [shape: bf16[256,128], index: 3, kind: input, shape index: {}]
  %s4 = inlined_call_operand.vmem [shape: f32[1,128], index: 4, kind: input, shape index: {}]
  %s5 = inlined_call_operand.hbm [shape: bf16[32,128], index: 5, kind: output, shape index: {}]
  %s6 = sld [smem:[#allocation0]]
  $region77: #{tpu_custom_call.1} parent=0
    _
  %s8 = ssub.s32 1, %s6
  %s9 = scalar_select 0, %s8, %s6
  $region1: #{tpu_custom_call.1} parent=0
    #allocation3 [shape = 'u8[8192]{0}', space=vmem, size = 0x2000, scoped, tag = 'input window, operand 0']
    #allocation4 [shape = 's32[2]{0}', space=sflag, size = 0x8, scoped, tag = 'scoped memory for tpu_custom_call.1']
    #allocation5 [shape = 's32[2]{0}', space=sflag, size = 0x8, scoped, tag = 'scoped memory for tpu_custom_call.1']
    #allocation6 [shape = 'u8[32768]{0}', space=vmem, size = 0x8000, scoped, tag = 'input window, operand 1, single buffered']
    #allocation7 [shape = 's32[1]{0}', space=sflag, size = 0x4, scoped, tag = 'scoped memory for tpu_custom_call.1']
    #allocation8 [shape = 'u8[16384]{0}', space=vmem, size = 0x4000, scoped, tag = 'input window, operand 2']
    #allocation9 [shape = 'u8[65536]{0}', space=vmem, size = 0x10000, scoped, tag = 'input window, operand 3, single buffered']
    #allocation10 [shape = 'u8[8192]{0}', space=vmem, size = 0x2000, scoped, tag = 'output window, operand 0']
    %10 = vsyncpa [#allocation4], 0
    %s11 = scalar_lea.sflag [#allocation4], 1
    %12 = vsyncpa %s11, 0
    %13 = vsyncpa [#allocation7], 0
    %14 = vsyncpa [#allocation5], 0
    %s15 = scalar_lea.sflag [#allocation5], 1
    %16 = vsyncpa %s15, 0
    loop: start=0, step=1, limit=4
    $region2: #{tpu_custom_call.1} parent=1 // loop_pre_header
      _
    $region3: #{tpu_custom_call.1} parent=1 // loop_header
      %s18 = sphi 0, %s22
      %p19 = scmp.ge.s32.totalorder %s18, 4
      %s25 = sphi 0, %s37
      %s26 = sphi 0, %s33
      %s27 = sphi 0, %s25
      %s28 = sphi 0, %s26
      %s29 = sphi 0, %s27
      %s30 = sphi 0, %s28
      %s42 = sphi 0, %s44
      %s45 = sphi 0, %s42
      %s46 = sphi 0, %s45
      %s62 = sphi 0, %s46
      %s68 = sphi 0, %s70
      %s71 = sphi 0, %s68
      %s72 = sphi 0, %s71
      %s88 = sphi 0, %s72
      %s94 = sphi 0, %s96
      %s97 = sphi 0, %s94
      %s98 = sphi 0, %s97
      %s114 = sphi 0, %s98
      %s118 = sphi 0, %s118
      %s120 = sphi 0, %s118
      %s121 = sphi 0, %s120
      %s135 = sphi 0, %s121
      %s139 = sphi 0, %s139
      %s141 = sphi 0, %s139
      %s142 = sphi 0, %s141
      %s156 = sphi 0, %s142
      %s162 = sphi 0, %s164
      %s165 = sphi 0, %s162
      %s166 = sphi 0, %s165
      %s182 = sphi 0, %s166
    $region4: #{tpu_custom_call.1} parent=1 // loop_header_branch
      %21 = sbr.rel (%p19) target = $region8
    $region5: #{tpu_custom_call.1} parent=1 // loop_body
      %s23 = ssub.s32 %s18, 1
      %s24 = ssub.s32 %s18, 2
      %s31 = sadd.s32 1, %s26
      %p32 = scmp.ge.s32.totalorder %s31, 1
      %s33 = scalar_select %p32, 0, %s31
      %s34 = sadd.s32 1, %s25
      %s35 = scalar_select %p32, %s34, %s25
      %p36 = scmp.ge.s32.totalorder %s35, 2
      %s37 = scalar_select %p36, 0, %s35
      %s38 = ssub.s32 %s25, %s37
      %s39 = ssub.s32 %s26, %s33
      %s40 = sor.u32 %s38, %s39
      %p41 = scmp.eq.s32.totalorder %s40, 0
      %s43 = sadd.s32 %s42, 1
      %s44 = scalar_select %p41, %s42, %s43
      %p47 = pneg %p41
      %p48 = scmp.eq.s32.totalorder %s18, 1
      %p49 = por %p47, %p48
      %p50 = scmp.ne.s32.totalorder %s42, %s45
      %p51 = scmp.eq.s32.totalorder %s18, 0
      %p52 = por %p50, %p51
      %p53 = scmp.ne.s32.totalorder %s42, %s45
      %p54 = scmp.eq.s32.totalorder %s23, 1
      %p55 = por %p53, %p54
      %p56 = scmp.ne.s32.totalorder %s45, %s46
      %p57 = scmp.eq.s32.totalorder %s23, 0
      %p58 = por %p56, %p57
      %p59 = scmp.ne.s32.totalorder %s45, %s46
      %p60 = scmp.eq.s32.totalorder %s24, 1
      %p61 = por %p59, %p60
      %p63 = scmp.ne.s32.totalorder %s46, %s62
      %p64 = scmp.eq.s32.totalorder %s24, 0
      %p65 = por %p63, %p64
      %s66 = ssub.s32 %s26, %s33
      %p67 = scmp.eq.s32.totalorder %s66, 0
      %s69 = sadd.s32 %s68, 1
      %s70 = scalar_select %p67, %s68, %s69
      %p73 = pneg %p67
      %p74 = scmp.eq.s32.totalorder %s18, 1
      %p75 = por %p73, %p74
      %p76 = scmp.ne.s32.totalorder %s68, %s71
      %p77 = scmp.eq.s32.totalorder %s18, 0
      %p78 = por %p76, %p77
      %p79 = scmp.ne.s32.totalorder %s68, %s71
      %p80 = scmp.eq.s32.totalorder %s23, 1
      %p81 = por %p79, %p80
      %p82 = scmp.ne.s32.totalorder %s71, %s72
      %p83 = scmp.eq.s32.totalorder %s23, 0
      %p84 = por %p82, %p83
      %p85 = scmp.ne.s32.totalorder %s71, %s72
      %p86 = scmp.eq.s32.totalorder %s24, 1
      %p87 = por %p85, %p86
      %p89 = scmp.ne.s32.totalorder %s72, %s88
      %p90 = scmp.eq.s32.totalorder %s24, 0
      %p91 = por %p89, %p90
      %s92 = ssub.s32 %s25, %s37
      %p93 = scmp.eq.s32.totalorder %s92, 0
      %s95 = sadd.s32 %s94, 1
      %s96 = scalar_select %p93, %s94, %s95
      %p99 = pneg %p93
      %p100 = scmp.eq.s32.totalorder %s18, 1
      %p101 = por %p99, %p100
      %p102 = scmp.ne.s32.totalorder %s94, %s97
      %p103 = scmp.eq.s32.totalorder %s18, 0
      %p104 = por %p102, %p103
      %p105 = scmp.ne.s32.totalorder %s94, %s97
      %p106 = scmp.eq.s32.totalorder %s23, 1
      %p107 = por %p105, %p106
      %p108 = scmp.ne.s32.totalorder %s97, %s98
      %p109 = scmp.eq.s32.totalorder %s23, 0
      %p110 = por %p108, %p109
      %p111 = scmp.ne.s32.totalorder %s97, %s98
      %p112 = scmp.eq.s32.totalorder %s24, 1
      %p113 = por %p111, %p112
      %p115 = scmp.ne.s32.totalorder %s98, %s114
      %p116 = scmp.eq.s32.totalorder %s24, 0
      %p117 = por %p115, %p116
      %s119 = sadd.s32 %s118, 1
      %p122 = scmp.eq.s32.totalorder %s18, 1
      %p123 = scmp.ne.s32.totalorder %s118, %s120
      %p124 = scmp.eq.s32.totalorder %s18, 0
      %p125 = por %p123, %p124
      %p126 = scmp.ne.s32.totalorder %s118, %s120
      %p127 = scmp.eq.s32.totalorder %s23, 1
      %p128 = por %p126, %p127
      %p129 = scmp.ne.s32.totalorder %s120, %s121
      %p130 = scmp.eq.s32.totalorder %s23, 0
      %p131 = por %p129, %p130
      %p132 = scmp.ne.s32.totalorder %s120, %s121
      %p133 = scmp.eq.s32.totalorder %s24, 1
      %p134 = por %p132, %p133
      %p136 = scmp.ne.s32.totalorder %s121, %s135
      %p137 = scmp.eq.s32.totalorder %s24, 0
      %p138 = por %p136, %p137
      %s140 = sadd.s32 %s139, 1
      %p143 = scmp.eq.s32.totalorder %s18, 1
      %p144 = scmp.ne.s32.totalorder %s139, %s141
      %p145 = scmp.eq.s32.totalorder %s18, 0
      %p146 = por %p144, %p145
      %p147 = scmp.ne.s32.totalorder %s139, %s141
      %p148 = scmp.eq.s32.totalorder %s23, 1
      %p149 = por %p147, %p148
      %p150 = scmp.ne.s32.totalorder %s141, %s142
      %p151 = scmp.eq.s32.totalorder %s23, 0
      %p152 = por %p150, %p151
      %p153 = scmp.ne.s32.totalorder %s141, %s142
      %p154 = scmp.eq.s32.totalorder %s24, 1
      %p155 = por %p153, %p154
      %p157 = scmp.ne.s32.totalorder %s142, %s156
      %p158 = scmp.eq.s32.totalorder %s24, 0
      %p159 = por %p157, %p158
      %s160 = ssub.s32 %s25, %s37
      %p161 = scmp.eq.s32.totalorder %s160, 0
      %s163 = sadd.s32 %s162, 1
      %s164 = scalar_select %p161, %s162, %s163
      %p167 = pneg %p161
      %p168 = scmp.eq.s32.totalorder %s18, 1
      %p169 = por %p167, %p168
      %p170 = scmp.ne.s32.totalorder %s162, %s165
      %p171 = scmp.eq.s32.totalorder %s18, 0
      %p172 = por %p170, %p171
      %p173 = scmp.ne.s32.totalorder %s162, %s165
      %p174 = scmp.eq.s32.totalorder %s23, 1
      %p175 = por %p173, %p174
      %p176 = scmp.ne.s32.totalorder %s165, %s166
      %p177 = scmp.eq.s32.totalorder %s23, 0
      %p178 = por %p176, %p177
      %p179 = scmp.ne.s32.totalorder %s165, %s166
      %p180 = scmp.eq.s32.totalorder %s24, 1
      %p181 = por %p179, %p180
      %p183 = scmp.ne.s32.totalorder %s166, %s182
      %p184 = scmp.eq.s32.totalorder %s24, 0
      %p185 = por %p183, %p184
      %p186 = scmp.le.s32.totalorder 1, %s18
      %p187 = scmp.lt.s32.totalorder %s18, 3
      %p188 = pnand %p186, %p187
      %p189 = pneg %p188
      // Predicated region
      $region9: #{tpu_custom_call.1} parent=5 // pred_check
        _
      $region10: #{tpu_custom_call.1} parent=5 // pred_check_branch
        %191 = sbr.rel (%p188) target = $region12
      $region11: #{tpu_custom_call.1} parent=5 // pred_region
        %s192 = ssub.s32 %s18, 1
        // Predicated region
        $region13: #{tpu_custom_call.1} parent=11 // pred_check
          %p193 = pneg %p84
        $region14: #{tpu_custom_call.1} parent=11 // pred_check_branch
          %195 = sbr.rel (%p193) target = $region16
        $region15: #{tpu_custom_call.1} parent=11 // pred_region
          %s196 = smul.u32 16, %s28
          %s198 = ssub.s32 1024, 1024
          %199 = vsyncadd [#allocation7], %s198
          %s200 = smul.addr %s196, 64
          %s201 = scalar_lea.hbm %s1, %s200
          %s202 = sshll.u32 [#allocation6], 4
          %s203 = int_to_ptr.vmem [resolvable:$true] %s202
          %208 = dma.hbm_to_vmem [thread:$0]  %s201, 1024, %s203, [#allocation7], 64, 64, 4
        $region16: #{tpu_custom_call.1} parent=11 // pred_fallthru
          _
        // Predicated region
        $region17: #{tpu_custom_call.1} parent=11 // pred_check
          %p209 = pneg %p131
        $region18: #{tpu_custom_call.1} parent=11 // pred_check_branch
          %211 = sbr.rel (%p209) target = $region20
        $region19: #{tpu_custom_call.1} parent=11 // pred_region
          %s213 = ssub.s32 2048, 2048
          %214 = vsyncadd [#allocation7], %s213
          %s215 = sshll.u32 [#allocation9], 4
          %s216 = int_to_ptr.vmem [resolvable:$true] %s215
          %221 = dma.hbm_to_vmem [thread:$0]  %s3, 2048, %s216, [#allocation7], 64, 64, 4
        $region20: #{tpu_custom_call.1} parent=11 // pred_fallthru
          _
        // Predicated region
        $region21: #{tpu_custom_call.1} parent=11 // pred_check
          %p222 = pneg %p152
        $region22: #{tpu_custom_call.1} parent=11 // pred_check_branch
          %224 = sbr.rel (%p222) target = $region24
        $region23: #{tpu_custom_call.1} parent=11 // pred_region
          _
        $region24: #{tpu_custom_call.1} parent=11 // pred_fallthru
          _
      $region12: #{tpu_custom_call.1} parent=5 // pred_fallthru
        _
      %p225 = scmp.lt.s32.totalorder %s18, 2
      // Predicated region
      $region25: #{tpu_custom_call.1} parent=5 // pred_check
        %p226 = pneg %p225
      $region26: #{tpu_custom_call.1} parent=5 // pred_check_branch
        %228 = sbr.rel (%p226) target = $region28
      $region27: #{tpu_custom_call.1} parent=5 // pred_region
        // Predicated region
        $region29: #{tpu_custom_call.1} parent=27 // pred_check
          %p229 = pneg %p52
        $region30: #{tpu_custom_call.1} parent=27 // pred_check_branch
          %231 = sbr.rel (%p229) target = $region32
        $region31: #{tpu_custom_call.1} parent=27 // pred_region
          %s232 = sand.u32 %s18, 1
          %s233 = scalar_lea.sflag [#allocation4], %s232
          %s234 = sand.u32 %s42, 1
          %s235 = smul.addr %s234, 8
          %s236 = scalar_lea.vmem [#allocation3], %s235
          %s237 = smul.u32 2, %s25
          %s239 = ssub.s32 128, 128
          %240 = vsyncadd %s233, %s239
          %s241 = sadd.s32 %s26, %s237
          %s242 = smul.addr %s241, 64
          %s243 = scalar_lea.hbm %s0, %s242
          %s244 = sshll.u32 %s236, 4
          %s245 = int_to_ptr.vmem [resolvable:$true] %s244
          %250 = dma.hbm_to_vmem [thread:$0]  %s243, 128, %s245, %s233, 64, 64, 4
        $region32: #{tpu_custom_call.1} parent=27 // pred_fallthru
          _
        // Predicated region
        $region33: #{tpu_custom_call.1} parent=27 // pred_check
          %p251 = pneg %p104
        $region34: #{tpu_custom_call.1} parent=27 // pred_check_branch
          %253 = sbr.rel (%p251) target = $region36
        $region35: #{tpu_custom_call.1} parent=27 // pred_region
          %s254 = sand.u32 %s18, 1
          %s255 = scalar_lea.sflag [#allocation4], %s254
          %s256 = sand.u32 %s94, 1
          %s257 = smul.addr %s256, 16
          %s258 = scalar_lea.vmem [#allocation8], %s257
          %s259 = smul.u32 2, %s25
          %s261 = ssub.s32 256, 256
          %262 = vsyncadd %s255, %s261
          %s263 = smul.addr %s259, 2
          %s264 = smul.addr %s263, 64
          %s265 = scalar_lea.hbm %s2, %s264
          %s266 = sshll.u32 %s258, 4
          %s267 = int_to_ptr.vmem [resolvable:$true] %s266
          %272 = dma.hbm_to_vmem [thread:$0]  %s265, 256, %s267, %s255, 128, 128, 8
        $region36: #{tpu_custom_call.1} parent=27 // pred_fallthru
          _
      $region28: #{tpu_custom_call.1} parent=5 // pred_fallthru
        _
      %p273 = scmp.le.s32.totalorder 1, %s18
      %p274 = scmp.lt.s32.totalorder %s18, 3
      %p275 = pnand %p273, %p274
      %p276 = pneg %p275
      // Predicated region
      $region37: #{tpu_custom_call.1} parent=5 // pred_check
        _
      $region38: #{tpu_custom_call.1} parent=5 // pred_check_branch
        %278 = sbr.rel (%p275) target = $region40
      $region39: #{tpu_custom_call.1} parent=5 // pred_region
        %s279 = ssub.s32 %s18, 1
        %s280 = sand.u32 %s23, 1
        %s281 = scalar_lea.sflag [#allocation4], %s280
        %s282 = sand.u32 %s45, 1
        %s283 = smul.addr %s282, 8
        %s284 = scalar_lea.vmem [#allocation3], %s283
        // Predicated region
        $region41: #{tpu_custom_call.1} parent=39 // pred_check
          %p285 = pneg %p58
        $region42: #{tpu_custom_call.1} parent=39 // pred_check_branch
          %287 = sbr.rel (%p285) target = $region44
        $region43: #{tpu_custom_call.1} parent=39 // pred_region
          %288 = dma.done %s281, 128
        $region44: #{tpu_custom_call.1} parent=39 // pred_fallthru
          _
        // Predicated region
        $region45: #{tpu_custom_call.1} parent=39 // pred_check
          %p289 = pneg %p84
        $region46: #{tpu_custom_call.1} parent=39 // pred_check_branch
          %291 = sbr.rel (%p289) target = $region48
        $region47: #{tpu_custom_call.1} parent=39 // pred_region
          %292 = dma.done [#allocation7], 1024
        $region48: #{tpu_custom_call.1} parent=39 // pred_fallthru
          _
        %s293 = sand.u32 %s23, 1
        %s294 = scalar_lea.sflag [#allocation4], %s293
        %s295 = sand.u32 %s97, 1
        %s296 = smul.addr %s295, 16
        %s297 = scalar_lea.vmem [#allocation8], %s296
        // Predicated region
        $region49: #{tpu_custom_call.1} parent=39 // pred_check
          %p298 = pneg %p110
        $region50: #{tpu_custom_call.1} parent=39 // pred_check_branch
          %300 = sbr.rel (%p298) target = $region52
        $region51: #{tpu_custom_call.1} parent=39 // pred_region
          %301 = dma.done %s294, 256
        $region52: #{tpu_custom_call.1} parent=39 // pred_fallthru
          _
        // Predicated region
        $region53: #{tpu_custom_call.1} parent=39 // pred_check
          %p302 = pneg %p131
        $region54: #{tpu_custom_call.1} parent=39 // pred_check_branch
          %304 = sbr.rel (%p302) target = $region56
        $region55: #{tpu_custom_call.1} parent=39 // pred_region
          %305 = dma.done [#allocation7], 2048
        $region56: #{tpu_custom_call.1} parent=39 // pred_fallthru
          _
        %s306 = sand.u32 %s23, 1
        %s307 = scalar_lea.sflag [#allocation4], %s306
        %s308 = sand.u32 %s45, 1
        %s309 = smul.addr %s308, 8
        %s310 = scalar_lea.vmem [#allocation3], %s309
        %p311 = pneg %p58
        %p312 = pneg %p55
        %p313 = pneg %p84
        %p314 = pneg %p81
        %s315 = sand.u32 %s23, 1
        %s316 = scalar_lea.sflag [#allocation4], %s315
        %s317 = sand.u32 %s97, 1
        %s318 = smul.addr %s317, 16
        %s319 = scalar_lea.vmem [#allocation8], %s318
        %p320 = pneg %p110
        %p321 = pneg %p107
        %p322 = pneg %p131
        %p323 = pneg %p128
        %p324 = pneg %p152
        %p325 = pneg %p149
        %p326 = pneg %p178
        %p327 = pneg %p175
        %s328 = sand.u32 %s165, 1
        %s329 = scalar_lea.sflag [#allocation5], %s328
        %s330 = sand.u32 %s165, 1
        %s331 = smul.addr %s330, 8
        %s332 = scalar_lea.vmem [#allocation10], %s331
        %s333 = smul.u32 2, %s27
        %s334 = smul.u32 16, %s28
        %s335 = smul.u32 2, %s27
        %s336 = smul.u32 2, %s27
        %p338 = scmp.eq.s32.totalorder %s28, 0
        // Predicated region
        $region57: #{tpu_custom_call.1} parent=39 // pred_check
          %p339 = pneg %p338
        $region58: #{tpu_custom_call.1} parent=39 // pred_check_branch
          %341 = sbr.rel (%p339) target = $region60
        $region59: #{tpu_custom_call.1} parent=39 // pred_region
          %v342 = vld [vmem:[%s297] sm:$0xff]
          %v343 = vld [vmem:[%s297 + $0x8] sm:$0xff]
          %v344 = vld [vmem:[#allocation9] sm:$0xf]
          %v345 = vld [vmem:[#allocation9 + $0x4] sm:$0xf]
          %v346 = vld [vmem:[#allocation9 + $0x8] sm:$0xf]
          %v347 = vld [vmem:[#allocation9 + $0xc] sm:$0xf]
          %v348 = vld [vmem:[#allocation9 + $0x10] sm:$0xf]
          %v349 = vld [vmem:[#allocation9 + $0x14] sm:$0xf]
          %v350 = vld [vmem:[#allocation9 + $0x18] sm:$0xf]
          %v351 = vld [vmem:[#allocation9 + $0x1c] sm:$0xf]
          %v352 = vld [vmem:[#allocation9 + $0x20] sm:$0xf]
          %v353 = vld [vmem:[#allocation9 + $0x24] sm:$0xf]
          %v354 = vld [vmem:[#allocation9 + $0x28] sm:$0xf]
          %v355 = vld [vmem:[#allocation9 + $0x2c] sm:$0xf]
          %v356 = vld [vmem:[#allocation9 + $0x30] sm:$0xf]
          %v357 = vld [vmem:[#allocation9 + $0x34] sm:$0xf]
          %v358 = vld [vmem:[#allocation9 + $0x38] sm:$0xf]
          %v359 = vld [vmem:[#allocation9 + $0x3c] sm:$0xf]
          %v360 = vld [vmem:[#allocation9 + $0x40] sm:$0xf]
          %v361 = vld [vmem:[#allocation9 + $0x44] sm:$0xf]
          %v362 = vld [vmem:[#allocation9 + $0x48] sm:$0xf]
          %v363 = vld [vmem:[#allocation9 + $0x4c] sm:$0xf]
          %v364 = vld [vmem:[#allocation9 + $0x50] sm:$0xf]
          %v365 = vld [vmem:[#allocation9 + $0x54] sm:$0xf]
          %v366 = vld [vmem:[#allocation9 + $0x58] sm:$0xf]
          %v367 = vld [vmem:[#allocation9 + $0x5c] sm:$0xf]
          %v368 = vld [vmem:[#allocation9 + $0x60] sm:$0xf]
          %v369 = vld [vmem:[#allocation9 + $0x64] sm:$0xf]
          %v370 = vld [vmem:[#allocation9 + $0x68] sm:$0xf]
          %v371 = vld [vmem:[#allocation9 + $0x6c] sm:$0xf]
          %v372 = vld [vmem:[#allocation9 + $0x70] sm:$0xf]
          %v373 = vld [vmem:[#allocation9 + $0x74] sm:$0xf]
          %v374 = vld [vmem:[#allocation9 + $0x78] sm:$0xf]
          %v375 = vld [vmem:[#allocation9 + $0x7c] sm:$0xf]
          %v376 = vld [vmem:[%s4] sm:$0x1]
          %v378 = vlaneseq
          %v379 = vshrl.u32 %v378, 7
          %v380 = vsub.s32 0, %v379
          %v381 = vrot.slane %v376, %v380
          %v385 = vunpack.c.l.b16 %v342
          %v386 = vunpack.c.h.b16 %v342
          %v387 = vunpack.c.l.b16 %v343
          %v388 = vunpack.c.h.b16 %v343
          %v389 = vpack.c.b16 %v387, %v385
          %v390 = vpack.c.b16 %v388, %v386
          %v425 = vunpack.c.l.b16 %v344
          %v426 = vunpack.c.l.b16 %v345
          %v427 = vunpack.c.l.b16 %v346
          %v428 = vunpack.c.l.b16 %v347
          %v429 = vunpack.c.l.b16 %v348
          %v430 = vunpack.c.l.b16 %v349
          %v431 = vunpack.c.l.b16 %v350
          %v432 = vunpack.c.l.b16 %v351
          %v433 = vunpack.c.l.b16 %v352
          %v434 = vunpack.c.l.b16 %v353
          %v435 = vunpack.c.l.b16 %v354
          %v436 = vunpack.c.l.b16 %v355
          %v437 = vunpack.c.l.b16 %v356
          %v438 = vunpack.c.l.b16 %v357
          %v439 = vunpack.c.l.b16 %v358
          %v440 = vunpack.c.l.b16 %v359
          %v441 = vunpack.c.l.b16 %v360
          %v442 = vunpack.c.l.b16 %v361
          %v443 = vunpack.c.l.b16 %v362
          %v444 = vunpack.c.l.b16 %v363
          %v445 = vunpack.c.l.b16 %v364
          %v446 = vunpack.c.l.b16 %v365
          %v447 = vunpack.c.l.b16 %v366
          %v448 = vunpack.c.l.b16 %v367
          %v449 = vunpack.c.l.b16 %v368
          %v450 = vunpack.c.l.b16 %v369
          %v451 = vunpack.c.l.b16 %v370
          %v452 = vunpack.c.l.b16 %v371
          %v453 = vunpack.c.l.b16 %v372
          %v454 = vunpack.c.l.b16 %v373
          %v455 = vunpack.c.l.b16 %v374
          %v456 = vunpack.c.l.b16 %v375
          %v457 = vpack.c.b16 %v426, %v425
          %v458 = vpack.c.b16 %v428, %v427
          %v459 = vpack.c.b16 %v430, %v429
          %v460 = vpack.c.b16 %v432, %v431
          %v461 = vpack.c.b16 %v434, %v433
          %v462 = vpack.c.b16 %v436, %v435
          %v463 = vpack.c.b16 %v438, %v437
          %v464 = vpack.c.b16 %v440, %v439
          %v465 = vpack.c.b16 %v442, %v441
          %v466 = vpack.c.b16 %v444, %v443
          %v467 = vpack.c.b16 %v446, %v445
          %v468 = vpack.c.b16 %v448, %v447
          %v469 = vpack.c.b16 %v450, %v449
          %v470 = vpack.c.b16 %v452, %v451
          %v471 = vpack.c.b16 %v454, %v453
          %v472 = vpack.c.b16 %v456, %v455
          %489 = vmatprep.subr.bf16.mxu0 0
          %490 = vmatpush1.bf16.msra.mxu0 %v464
          %491 = vmatprep.subr.bf16.mxu0 0
          %492 = vmatpush1.bf16.msra.mxu0 %v463
          %493 = vmatprep.subr.bf16.mxu0 0
          %494 = vmatpush1.bf16.msra.mxu0 %v462
          %495 = vmatprep.subr.bf16.mxu0 0
          %496 = vmatpush1.bf16.msra.mxu0 %v461
          %497 = vmatprep.subr.bf16.mxu0 0
          %498 = vmatpush1.bf16.msra.mxu0 %v460
          %499 = vmatprep.subr.bf16.mxu0 0
          %500 = vmatpush1.bf16.msra.mxu0 %v459
          %501 = vmatprep.subr.bf16.mxu0 0
          %502 = vmatpush1.bf16.msra.mxu0 %v458
          %503 = vmatprep.subr.bf16.mxu0 0
          %504 = vmatpush1.bf16.msra.mxu0 %v457
          %505 = vmatprep.subr.bf16.mxu0 0
          %506 = vmatpush2.bf16.msra.mxu0 %v472
          %507 = vmatprep.subr.bf16.mxu0 0
          %508 = vmatpush2.bf16.msra.mxu0 %v471
          %509 = vmatprep.subr.bf16.mxu0 0
          %510 = vmatpush2.bf16.msra.mxu0 %v470
          %511 = vmatprep.subr.bf16.mxu0 0
          %512 = vmatpush2.bf16.msra.mxu0 %v469
          %513 = vmatprep.subr.bf16.mxu0 0
          %514 = vmatpush2.bf16.msra.mxu0 %v468
          %515 = vmatprep.subr.bf16.mxu0 0
          %516 = vmatpush2.bf16.msra.mxu0 %v467
          %517 = vmatprep.subr.bf16.mxu0 0
          %518 = vmatpush2.bf16.msra.mxu0 %v466
          %519 = vmatprep.subr.bf16.mxu0 0
          %520 = vmatpush2.bf16.msra.mxu0 %v465
          %521 = vmatprep.mubr.bf16.mxu0 %v390
          %522 = vmatmul.mubr.bf16.gmra.mxu0 %v389
          %v523 = vpop.f32.mrf.mxu0
          %v524 = vadd.f32 %v381, %v523
          %v525 = vpop.f32.mrf.mxu0
          %v526 = vpop.f32.mrf.mxu0
          %v527 = vadd.f32 %v381, %v526
          %v528 = vpop.f32.mrf.mxu0
          %529 = vdwg.mxu0
          %530 = vst [vmem:[#allocation2] sm:$0xff] %v524
          %531 = vst [vmem:[#allocation2 + $0x8] sm:$0xff] %v527
        $region60: #{tpu_custom_call.1} parent=39 // pred_fallthru
          _
        %v532 = vld [vmem:[#allocation2] sm:$0xff]
        %v533 = vld [vmem:[#allocation2 + $0x8] sm:$0xff]
        %v534 = vld [vmem:[%s284] sm:$0xf]
        %v535 = vld [vmem:[%s284 + $0x4] sm:$0xf]
        %v536 = vld [vmem:[#allocation6] sm:$0xf]
        %v537 = vld [vmem:[#allocation6 + $0x4] sm:$0xf]
        %v538 = vld [vmem:[#allocation6 + $0x8] sm:$0xf]
        %v539 = vld [vmem:[#allocation6 + $0xc] sm:$0xf]
        %v540 = vld [vmem:[#allocation6 + $0x10] sm:$0xf]
        %v541 = vld [vmem:[#allocation6 + $0x14] sm:$0xf]
        %v542 = vld [vmem:[#allocation6 + $0x18] sm:$0xf]
        %v543 = vld [vmem:[#allocation6 + $0x1c] sm:$0xf]
        %v544 = vld [vmem:[#allocation6 + $0x20] sm:$0xf]
        %v545 = vld [vmem:[#allocation6 + $0x24] sm:$0xf]
        %v546 = vld [vmem:[#allocation6 + $0x28] sm:$0xf]
        %v547 = vld [vmem:[#allocation6 + $0x2c] sm:$0xf]
        %v548 = vld [vmem:[#allocation6 + $0x30] sm:$0xf]
        %v549 = vld [vmem:[#allocation6 + $0x34] sm:$0xf]
        %v550 = vld [vmem:[#allocation6 + $0x38] sm:$0xf]
        %v551 = vld [vmem:[#allocation6 + $0x3c] sm:$0xf]
        %v554 = vunpack.c.l.b16 %v534
        %v555 = vunpack.c.l.b16 %v535
        %v556 = vpack.c.b16 %v555, %v554
        %v574 = vunpack.c.l.b16 %v536
        %v575 = vunpack.c.l.b16 %v537
        %v576 = vunpack.c.l.b16 %v538
        %v577 = vunpack.c.l.b16 %v539
        %v578 = vunpack.c.l.b16 %v540
        %v579 = vunpack.c.l.b16 %v541
        %v580 = vunpack.c.l.b16 %v542
        %v581 = vunpack.c.l.b16 %v543
        %v582 = vunpack.c.l.b16 %v544
        %v583 = vunpack.c.l.b16 %v545
        %v584 = vunpack.c.l.b16 %v546
        %v585 = vunpack.c.l.b16 %v547
        %v586 = vunpack.c.l.b16 %v548
        %v587 = vunpack.c.l.b16 %v549
        %v588 = vunpack.c.l.b16 %v550
        %v589 = vunpack.c.l.b16 %v551
        %v590 = vpack.c.b16 %v575, %v574
        %v591 = vpack.c.b16 %v577, %v576
        %v592 = vpack.c.b16 %v579, %v578
        %v593 = vpack.c.b16 %v581, %v580
        %v594 = vpack.c.b16 %v583, %v582
        %v595 = vpack.c.b16 %v585, %v584
        %v596 = vpack.c.b16 %v587, %v586
        %v597 = vpack.c.b16 %v589, %v588
        %606 = vmatprep.subr.bf16.mxu0 0
        %607 = vmatpush1.bf16.msra.mxu0 %v597
        %608 = vmatprep.subr.bf16.mxu0 0
        %609 = vmatpush1.bf16.msra.mxu0 %v596
        %610 = vmatprep.subr.bf16.mxu0 0
        %611 = vmatpush1.bf16.msra.mxu0 %v595
        %612 = vmatprep.subr.bf16.mxu0 0
        %613 = vmatpush1.bf16.msra.mxu0 %v594
        %614 = vmatprep.subr.bf16.mxu0 0
        %615 = vmatpush1.bf16.msra.mxu0 %v593
        %616 = vmatprep.subr.bf16.mxu0 0
        %617 = vmatpush1.bf16.msra.mxu0 %v592
        %618 = vmatprep.subr.bf16.mxu0 0
        %619 = vmatpush1.bf16.msra.mxu0 %v591
        %620 = vmatprep.subr.bf16.mxu0 0
        %621 = vmatpush1.bf16.msra.mxu0 %v590
        %622 = vmatprep.subr.bf16.mxu0 0
        %623 = vmatpush2.bf16.msra.mxu0 0
        %624 = vmatprep.subr.bf16.mxu0 0
        %625 = vmatpush2.bf16.msra.mxu0 0
        %626 = vmatprep.subr.bf16.mxu0 0
        %627 = vmatpush2.bf16.msra.mxu0 0
        %628 = vmatprep.subr.bf16.mxu0 0
        %629 = vmatpush2.bf16.msra.mxu0 0
        %630 = vmatprep.subr.bf16.mxu0 0
        %631 = vmatpush2.bf16.msra.mxu0 0
        %632 = vmatprep.subr.bf16.mxu0 0
        %633 = vmatpush2.bf16.msra.mxu0 0
        %634 = vmatprep.subr.bf16.mxu0 0
        %635 = vmatpush2.bf16.msra.mxu0 0
        %636 = vmatprep.subr.bf16.mxu0 0
        %637 = vmatpush2.bf16.msra.mxu0 0
        %638 = vmatprep.mubr.bf16.mxu0 0
        %639 = vmatmul.mubr.bf16.gmra.mxu0 %v556
        %v640 = vpop.f32.mrf.mxu0
        %v641 = vadd.f32 0.0, %v640
        %v642 = vpop.f32.mrf.mxu0
        %v643 = vpop.f32.mrf.mxu0
        %v644 = vadd.f32 0.0, %v643
        %v645 = vpop.f32.mrf.mxu0
        %646 = vdwg.mxu0
        %v647 = vadd.f32 %v532, %v641
        %v648 = vadd.f32 %v533, %v644
        %649 = vst [vmem:[#allocation2] sm:$0xff] %v647
        %650 = vst [vmem:[#allocation2 + $0x8] sm:$0xff] %v648
        // Predicated region
        $region61: #{tpu_custom_call.1} parent=39 // pred_check
          %p651 = pneg %p338
        $region62: #{tpu_custom_call.1} parent=39 // pred_check_branch
          %653 = sbr.rel (%p651) target = $region64
        $region63: #{tpu_custom_call.1} parent=39 // pred_region
          %v654 = vld [vmem:[#allocation2] sm:$0xff]
          %v655 = vld [vmem:[#allocation2 + $0x8] sm:$0xff]
          %v656 = vmax.f32 %v654, 0.0
          %v657 = vmax.f32 %v655, 0.0
          %v658 = vpack.c.bf16 %v657, %v656
          %v660 = vunpack.c.l.b16 %v658
          %v661 = vunpack.c.h.b16 %v658
          %v662 = vpack.c.b16 %v660, %v660
          %v663 = vpack.c.b16 %v661, %v661
          %666 = vst [vmem:[%s332] sm:$0xf] %v662
          %667 = vst [vmem:[%s332 + $0x4] sm:$0xf] %v663
        $region64: #{tpu_custom_call.1} parent=39 // pred_fallthru
          _
        %s668 = sand.u32 %s165, 1
        %s669 = scalar_lea.sflag [#allocation5], %s668
        %s670 = sand.u32 %s165, 1
        %s671 = smul.addr %s670, 8
        %s672 = scalar_lea.vmem [#allocation10], %s671
        // Predicated region
        $region65: #{tpu_custom_call.1} parent=39 // pred_check
          %p673 = pneg %p175
        $region66: #{tpu_custom_call.1} parent=39 // pred_check_branch
          %675 = sbr.rel (%p673) target = $region68
        $region67: #{tpu_custom_call.1} parent=39 // pred_region
          %s676 = smul.u32 2, %s27
          %s678 = ssub.s32 128, 128
          %679 = vsyncadd %s669, %s678
          %s680 = smul.addr %s676, 64
          %s681 = scalar_lea.hbm %s5, %s680
          %s682 = sshll.u32 %s672, 4
          %s683 = int_to_ptr.vmem [resolvable:$true] %s682
          %688 = dma.vmem_to_hbm [thread:$0]  %s683, 128, %s681, %s669, 64, 64, 4
        $region68: #{tpu_custom_call.1} parent=39 // pred_fallthru
          _
      $region40: #{tpu_custom_call.1} parent=5 // pred_fallthru
        _
      %p689 = scmp.le.s32.totalorder 2, %s18
      // Predicated region
      $region69: #{tpu_custom_call.1} parent=5 // pred_check
        %p690 = pneg %p689
      $region70: #{tpu_custom_call.1} parent=5 // pred_check_branch
        %692 = sbr.rel (%p690) target = $region72
      $region71: #{tpu_custom_call.1} parent=5 // pred_region
        %s693 = ssub.s32 %s18, 2
        // Predicated region
        $region73: #{tpu_custom_call.1} parent=71 // pred_check
          %p694 = pneg %p181
        $region74: #{tpu_custom_call.1} parent=71 // pred_check_branch
          %696 = sbr.rel (%p694) target = $region76
        $region75: #{tpu_custom_call.1} parent=71 // pred_region
          %s697 = sand.u32 %s166, 1
          %s698 = scalar_lea.sflag [#allocation5], %s697
          %s699 = sand.u32 %s166, 1
          %s700 = smul.addr %s699, 8
          %s701 = scalar_lea.vmem [#allocation10], %s700
          %702 = dma.done %s698, 128
        $region76: #{tpu_custom_call.1} parent=71 // pred_fallthru
          _
      $region72: #{tpu_custom_call.1} parent=5 // pred_fallthru
        _
    $region6: #{tpu_custom_call.1} parent=1 // loop_footer
      %s22 = sadd.s32 1, %s18
    $region7: #{tpu_custom_call.1} parent=1 // loop_footer_branch
      %17 = sbr.rel target = $region3
    $region8: #{tpu_custom_call.1} parent=1 // loop_exit
      _
    %703 = vsyncpa [#allocation4], 1
    %s704 = scalar_lea.sflag [#allocation4], 1
    %705 = vsyncpa %s704, 1
    %706 = vsyncpa [#allocation7], 1
    %707 = vsyncpa [#allocation5], 1
    %s708 = scalar_lea.sflag [#allocation5], 1
    %709 = vsyncpa %s708, 1

</llo_original>
